<compile_context>
chip_gen: v6e
topology: v6e:2x2x1
jax: 0.10.0
libtpu: 0.0.40
codegen_flags: <defaults>
</compile_context>

<pallas_src>
import jax
import jax.numpy as jnp
from jax import lax
from jax.experimental import pallas as pl
from jax.experimental.pallas import tpu as pltpu


def _pad8(n):
    return -(-n // 8) * 8


def _lstm_ae_kernel(x_ref,     # (TB, T, D)            batch-first input tile
                    enc_ref,   # (pD+pH+8, 4H)         [W_ih_e^T | W_hh_e^T | b_e]
                    fce_ref,   # (pH+8, L)             [W_fc_enc^T | b_fc_enc]
                    fcd_ref,   # (pL+8, H)             [W_fc_dec^T | b_fc_dec]
                    dec_ref,   # (pH+pD+8, 4D)         [W_ih_d^T | W_hh_d^T | b_d]
                    out_ref):  # (TB, T*D)             lane-dense output slab
    TB, T, D = x_ref.shape
    H = enc_ref.shape[1] // 4
    L = fce_ref.shape[1]
    pD, pH, pL = _pad8(D), _pad8(H), _pad8(L)

    def gates(pre, n):
        # PyTorch gate order: i, f, g, o
        i = jax.nn.sigmoid(pre[:, 0 * n:1 * n])
        f = jax.nn.sigmoid(pre[:, 1 * n:2 * n])
        g = jnp.tanh(pre[:, 2 * n:3 * n])
        o = jax.nn.sigmoid(pre[:, 3 * n:4 * n])
        return i, f, g, o

    # ---- hoist every weight / bias read (static, 8-row-aligned pack slices) ----
    W_ih_e = enc_ref[0:D, :]                       # (D, 4H)
    W_hh_e = enc_ref[pD:pD + H, :]                 # (H, 4H)
    b_e = enc_ref[pD + pH:pD + pH + 1, :]          # (1, 4H)
    W_fe = fce_ref[0:H, :]                         # (H, L)
    b_fe = fce_ref[pH:pH + 1, :]                   # (1, L)
    W_fd = fcd_ref[0:L, :]                         # (L, H)
    b_fd = fcd_ref[pL:pL + 1, :]                   # (1, H)
    W_ih_d = dec_ref[0:H, :]                       # (H, 4D)
    W_hh_d = dec_ref[pH:pH + D, :]                 # (D, 4D)
    b_d = dec_ref[pH + pD:pH + pD + 1, :]          # (1, 4D)

    # ---- bulk encoder input projection, fed in (t, b) row order --------------
    # One amortized transpose of x (D cols) instead of T per-step sublane
    # gathers of the (·, 4H) result inside the serial chain.
    xt = jnp.transpose(x_ref[...], (1, 0, 2)).reshape(T * TB, D)
    pre_x_enc = (jnp.dot(xt, W_ih_e, preferred_element_type=jnp.float32)
                 + b_e).reshape(T, TB, 4 * H)      # time-major: [t] is contiguous

    # ---- encoder LSTM: only h @ W_hh in the serial chain ----------------------
    h = jnp.zeros((TB, H), jnp.float32)
    c = jnp.zeros((TB, H), jnp.float32)
    for t in range(T):                              # fully unrolled (T static/small)
        pre = pre_x_enc[t] + jnp.dot(h, W_hh_e,
                                     preferred_element_type=jnp.float32)
        i, f, g, o = gates(pre, H)
        c = f * c + i * g
        h = o * jnp.tanh(c)

    # ---- bottleneck: encoder_fc -> relu(decoder_fc) ---------------------------
    latent = jnp.dot(h, W_fe, preferred_element_type=jnp.float32) + b_fe
    dec_in = jnp.maximum(
        jnp.dot(latent, W_fd, preferred_element_type=jnp.float32) + b_fd, 0.0)

    # decoder input is identical at every timestep -> single hoisted projection
    pre_x_dec = jnp.dot(dec_in, W_ih_d, preferred_element_type=jnp.float32) + b_d

    # ---- decoder LSTM (hidden size = D_in); store each step directly ----------
    hd = jnp.zeros((TB, D), jnp.float32)
    cd = jnp.zeros((TB, D), jnp.float32)
    for t in range(T):                              # fully unrolled
        pre = pre_x_dec + jnp.dot(hd, W_hh_d,
                                  preferred_element_type=jnp.float32)
        i, f, g, o = gates(pre, D)
        cd = f * cd + i * g
        hd = o * jnp.tanh(cd)
        out_ref[:, t * D:(t + 1) * D] = hd.astype(out_ref.dtype)


def _batch_tile(B):
    """Largest convenient batch tile: whole batch when small, 128/256 when large."""
    if B <= 128:
        return B
    for tb in (256, 128, 64, 32, 16, 8):
        if B % tb == 0:
            return tb
    return B


def lstm_autoencoder_forward(x, packed):
    """x: (B, T, D_in) float32 (batch-first) -> decoded: (B, T, D_in) float32."""
    B, T, D = x.shape
    TB = _batch_tile(B)
    grid = (B // TB,)

    enc, fce, fcd, dec = packed["enc"], packed["fce"], packed["fcd"], packed["dec"]

    def resident(a):  # full-array block, constant index_map -> stays VMEM-resident
        return pl.BlockSpec(a.shape, lambda b, _nd=a.ndim: (0,) * _nd)

    out2d = pl.pallas_call(
        _lstm_ae_kernel,
        out_shape=jax.ShapeDtypeStruct((B, T * D), jnp.float32),
        grid=grid,
        in_specs=[
            pl.BlockSpec((TB, T, D), lambda b: (b, 0, 0)),
            resident(enc), resident(fce), resident(fcd), resident(dec),
        ],
        out_specs=pl.BlockSpec((TB, T * D), lambda b: (b, 0)),
        compiler_params=pltpu.CompilerParams(
            dimension_semantics=("parallel",),       # batch tiles across v7x TCs
            vmem_limit_bytes=32 * 1024 * 1024,       # explicit; pre_x_enc scaling hazard
        ),
    )(x, enc, fce, fcd, dec)
    # Row-major (B, T*D) -> (B, T, D) is a free reinterpretation (no data movement).
    return out2d.reshape(B, T, D)


def init_params(key, input_dim, hidden_dim, latent_dim):
    """Deterministic synthetic parameters with PyTorch nn.LSTM / nn.Linear shapes,
    pre-transposed / bias-summed into the kernel's logical layout."""
    D, H, L = input_dim, hidden_dim, latent_dim
    ks = jax.random.split(key, 12)

    def u(k, shape, scale):
        return jax.random.uniform(k, shape, jnp.float32, -scale, scale)

    sH, sD, sL = 1.0 / H ** 0.5, 1.0 / D ** 0.5, 1.0 / L ** 0.5
    # encoder LSTM (PyTorch shapes)
    w_ih_e = u(ks[0], (4 * H, D), sH)
    w_hh_e = u(ks[1], (4 * H, H), sH)
    b_ih_e = u(ks[2], (4 * H,), sH)
    b_hh_e = u(ks[3], (4 * H,), sH)
    # encoder_fc: Linear(H -> L)
    w_fc_e = u(ks[4], (L, H), sH)
    b_fc_e = u(ks[5], (L,), sH)
    # decoder_fc: Linear(L -> H)
    w_fc_d = u(ks[6], (H, L), sL)
    b_fc_d = u(ks[7], (H,), sL)
    # decoder LSTM: input H, hidden D
    w_ih_d = u(ks[8], (4 * D, H), sD)
    w_hh_d = u(ks[9], (4 * D, D), sD)
    b_ih_d = u(ks[10], (4 * D,), sD)
    b_hh_d = u(ks[11], (4 * D,), sD)

    return dict(
        we_ih=w_ih_e.T, we_hh=w_hh_e.T, be=(b_ih_e + b_hh_e)[None, :],
        wfe=w_fc_e.T, bfe=b_fc_e[None, :],
        wfd=w_fc_d.T, bfd=b_fc_d[None, :],
        wd_ih=w_ih_d.T, wd_hh=w_hh_d.T, bd=(b_ih_d + b_hh_d)[None, :],
    )


def pack_params(p):
    """Pack the 10 logical parameter arrays into 4 sublane-aligned VMEM slabs."""
    D = p["we_ih"].shape[0]
    H = p["we_hh"].shape[0]
    L = p["wfe"].shape[1]
    pD, pH, pL = _pad8(D), _pad8(H), _pad8(L)

    def pack(shape, pieces):
        out = jnp.zeros(shape, jnp.float32)
        for r0, arr in pieces:
            out = out.at[r0:r0 + arr.shape[0], :].set(arr)
        return out

    enc = pack((pD + pH + 8, 4 * H),
               [(0, p["we_ih"]), (pD, p["we_hh"]), (pD + pH, p["be"])])
    fce = pack((pH + 8, L), [(0, p["wfe"]), (pH, p["bfe"])])
    fcd = pack((pL + 8, H), [(0, p["wfd"]), (pL, p["bfd"])])
    dec = pack((pH + pD + 8, 4 * D),
               [(0, p["wd_ih"]), (pH, p["wd_hh"]), (pH + pD, p["bd"])])
    return dict(enc=enc, fce=fce, fcd=fcd, dec=dec)


def reference_forward(x, params):
    """Pure-JAX reference matching the PyTorch forward."""
    B, T, D = x.shape
    H = params["we_hh"].shape[0]

    def lstm(seq, w_ih, w_hh, b, hd):
        def step(carry, x_t):
            h, c = carry
            pre = x_t @ w_ih + h @ w_hh + b
            i = jax.nn.sigmoid(pre[:, :hd])
            f = jax.nn.sigmoid(pre[:, hd:2 * hd])
            g = jnp.tanh(pre[:, 2 * hd:3 * hd])
            o = jax.nn.sigmoid(pre[:, 3 * hd:])
            c_new = f * c + i * g
            h_new = o * jnp.tanh(c_new)
            return (h_new, c_new), h_new
        init = (jnp.zeros((B, hd), jnp.float32), jnp.zeros((B, hd), jnp.float32))
        (h_T, _), hs = lax.scan(step, init, jnp.transpose(seq, (1, 0, 2)))
        return h_T, jnp.transpose(hs, (1, 0, 2))

    h_T, _ = lstm(x, params["we_ih"], params["we_hh"], params["be"], H)
    latent = h_T @ params["wfe"] + params["bfe"]
    dec_in = jnp.maximum(latent @ params["wfd"] + params["bfd"], 0.0)
    dec_seq = jnp.broadcast_to(dec_in[:, None, :], (B, T, dec_in.shape[-1]))
    _, decoded = lstm(dec_seq, params["wd_ih"], params["wd_hh"], params["bd"], D)
    return decoded


if __name__ == "__main__":
    B, T, INPUT_DIM, HIDDEN_DIM, LATENT_DIM = 4, 8, 8, 32, 16

    key = jax.random.PRNGKey(0)
    kx, kp = jax.random.split(key)
    x = jax.random.normal(kx, (B, T, INPUT_DIM), jnp.float32)
    params = init_params(kp, INPUT_DIM, HIDDEN_DIM, LATENT_DIM)
    packed = pack_params(params)

    decoded = jax.jit(lstm_autoencoder_forward)(x, packed)
    decoded = jax.block_until_ready(decoded)

    assert decoded.shape == (B, T, INPUT_DIM)
    ref = reference_forward(x, params)
    max_err = float(jnp.max(jnp.abs(decoded - ref)))
    if max_err > 1e-4:
        raise AssertionError(f"Pallas kernel mismatch vs reference: {max_err}")

    print("KERNEL_OK")
</pallas_src>

<mosaic_0001>
module attributes {stable_mosaic.version = 11 : i64} {
  func.func @_lstm_ae_kernel(%arg0: i32, %arg1: memref<4x8x8xf32, #tpu.memory_space<vmem>>, %arg2: memref<48x128xf32, #tpu.memory_space<vmem>>, %arg3: memref<40x16xf32, #tpu.memory_space<vmem>>, %arg4: memref<24x32xf32, #tpu.memory_space<vmem>>, %arg5: memref<48x32xf32, #tpu.memory_space<vmem>>, %arg6: memref<4x64xf32, #tpu.memory_space<vmem>>) attributes {dimension_semantics = [#tpu.dimension_semantics<parallel>], iteration_bounds = array<i64: 1>, scalar_prefetch = 0 : i64, scratch_operands = 0 : i64, tpu.core_type = #tpu.core_type<tc>, window_params = [{transform_indices = @transform_0, window_bounds = array<i64: 4, 8, 8>}, {pipeline_mode = #tpu.pipeline_mode<synchronous>, transform_indices = @transform_1, window_bounds = array<i64: 48, 128>}, {pipeline_mode = #tpu.pipeline_mode<synchronous>, transform_indices = @transform_2, window_bounds = array<i64: 40, 16>}, {pipeline_mode = #tpu.pipeline_mode<synchronous>, transform_indices = @transform_3, window_bounds = array<i64: 24, 32>}, {pipeline_mode = #tpu.pipeline_mode<synchronous>, transform_indices = @transform_4, window_bounds = array<i64: 48, 32>}, {transform_indices = @transform_5, window_bounds = array<i64: 4, 64>}]} {
    %c0 = arith.constant 0 : index
    %c0_0 = arith.constant 0 : index
    %0 = vector.load %arg2[%c0, %c0_0] : memref<48x128xf32, #tpu.memory_space<vmem>>, vector<8x128xf32>
    %c8 = arith.constant 8 : index
    %c0_1 = arith.constant 0 : index
    %1 = vector.load %arg2[%c8, %c0_1] : memref<48x128xf32, #tpu.memory_space<vmem>>, vector<32x128xf32>
    %c40 = arith.constant 40 : index
    %c0_2 = arith.constant 0 : index
    %2 = vector.load %arg2[%c40, %c0_2] : memref<48x128xf32, #tpu.memory_space<vmem>>, vector<1x128xf32>
    %c0_3 = arith.constant 0 : index
    %c0_4 = arith.constant 0 : index
    %3 = vector.load %arg3[%c0_3, %c0_4] : memref<40x16xf32, #tpu.memory_space<vmem>>, vector<32x16xf32>
    %c32 = arith.constant 32 : index
    %c0_5 = arith.constant 0 : index
    %4 = vector.load %arg3[%c32, %c0_5] : memref<40x16xf32, #tpu.memory_space<vmem>>, vector<1x16xf32>
    %c0_6 = arith.constant 0 : index
    %c0_7 = arith.constant 0 : index
    %5 = vector.load %arg4[%c0_6, %c0_7] : memref<24x32xf32, #tpu.memory_space<vmem>>, vector<16x32xf32>
    %c16 = arith.constant 16 : index
    %c0_8 = arith.constant 0 : index
    %6 = vector.load %arg4[%c16, %c0_8] : memref<24x32xf32, #tpu.memory_space<vmem>>, vector<1x32xf32>
    %c0_9 = arith.constant 0 : index
    %c0_10 = arith.constant 0 : index
    %7 = vector.load %arg5[%c0_9, %c0_10] : memref<48x32xf32, #tpu.memory_space<vmem>>, vector<32x32xf32>
    %c32_11 = arith.constant 32 : index
    %c0_12 = arith.constant 0 : index
    %8 = vector.load %arg5[%c32_11, %c0_12] : memref<48x32xf32, #tpu.memory_space<vmem>>, vector<8x32xf32>
    %c40_13 = arith.constant 40 : index
    %c0_14 = arith.constant 0 : index
    %9 = vector.load %arg5[%c40_13, %c0_14] : memref<48x32xf32, #tpu.memory_space<vmem>>, vector<1x32xf32>
    %c0_15 = arith.constant 0 : index
    %c0_16 = arith.constant 0 : index
    %c0_17 = arith.constant 0 : index
    %10 = vector.load %arg1[%c0_15, %c0_16, %c0_17] : memref<4x8x8xf32, #tpu.memory_space<vmem>>, vector<4x8x8xf32>
    %11 = tpu.transpose %10, [1, 0, 2] : vector<4x8x8xf32> -> vector<8x4x8xf32>
    %12 = vector.shape_cast %11 : vector<8x4x8xf32> to vector<32x8xf32>
    %cst = arith.constant dense<0.000000e+00> : vector<32x128xf32>
    %13 = tpu.matmul %12, %0, %cst {dimension_numbers = #tpu.dot_dimension_numbers<[1], [0], [0], [1], [0, 0, 1, 1], [], []>} : vector<32x8xf32>, vector<8x128xf32>, vector<32x128xf32> -> vector<32x128xf32>
    %14 = vector.broadcast %2 : vector<1x128xf32> to vector<32x128xf32>
    %15 = arith.addf %13, %14 : vector<32x128xf32>
    %16 = vector.shape_cast %15 : vector<32x128xf32> to vector<8x4x128xf32>
    %cst_18 = arith.constant 0.000000e+00 : f32
    %17 = vector.broadcast %cst_18 : f32 to vector<4x32xf32>
    %cst_19 = arith.constant 0.000000e+00 : f32
    %18 = vector.broadcast %cst_19 : f32 to vector<4x32xf32>
    %19 = vector.extract_strided_slice %16 {offsets = [0, 0, 0], sizes = [1, 4, 128], strides = [1, 1, 1]} : vector<8x4x128xf32> to vector<1x4x128xf32>
    %20 = vector.shape_cast %19 : vector<1x4x128xf32> to vector<4x128xf32>
    %cst_20 = arith.constant dense<0.000000e+00> : vector<4x128xf32>
    %21 = tpu.matmul %17, %1, %cst_20 {dimension_numbers = #tpu.dot_dimension_numbers<[1], [0], [0], [1], [0, 0, 1, 1], [], []>} : vector<4x32xf32>, vector<32x128xf32>, vector<4x128xf32> -> vector<4x128xf32>
    %22 = arith.addf %20, %21 : vector<4x128xf32>
    %23 = vector.extract_strided_slice %22 {offsets = [0, 0], sizes = [4, 32], strides = [1, 1]} : vector<4x128xf32> to vector<4x32xf32>
    %24 = arith.negf %23 : vector<4x32xf32>
    %25 = math.exp %24 : vector<4x32xf32>
    %cst_21 = arith.constant 1.000000e+00 : f32
    %26 = vector.broadcast %cst_21 : f32 to vector<4x32xf32>
    %27 = arith.addf %26, %25 : vector<4x32xf32>
    %28 = arith.divf %26, %27 : vector<4x32xf32>
    %29 = vector.extract_strided_slice %22 {offsets = [0, 32], sizes = [4, 32], strides = [1, 1]} : vector<4x128xf32> to vector<4x32xf32>
    %30 = arith.negf %29 : vector<4x32xf32>
    %31 = math.exp %30 : vector<4x32xf32>
    %cst_22 = arith.constant 1.000000e+00 : f32
    %32 = vector.broadcast %cst_22 : f32 to vector<4x32xf32>
    %33 = arith.addf %32, %31 : vector<4x32xf32>
    %34 = arith.divf %32, %33 : vector<4x32xf32>
    %35 = vector.extract_strided_slice %22 {offsets = [0, 64], sizes = [4, 32], strides = [1, 1]} : vector<4x128xf32> to vector<4x32xf32>
    %36 = math.tanh %35 : vector<4x32xf32>
    %37 = vector.extract_strided_slice %22 {offsets = [0, 96], sizes = [4, 32], strides = [1, 1]} : vector<4x128xf32> to vector<4x32xf32>
    %38 = arith.negf %37 : vector<4x32xf32>
    %39 = math.exp %38 : vector<4x32xf32>
    %cst_23 = arith.constant 1.000000e+00 : f32
    %40 = vector.broadcast %cst_23 : f32 to vector<4x32xf32>
    %41 = arith.addf %40, %39 : vector<4x32xf32>
    %42 = arith.divf %40, %41 : vector<4x32xf32>
    %43 = arith.mulf %34, %18 : vector<4x32xf32>
    %44 = arith.mulf %28, %36 : vector<4x32xf32>
    %45 = arith.addf %43, %44 : vector<4x32xf32>
    %46 = math.tanh %45 : vector<4x32xf32>
    %47 = arith.mulf %42, %46 : vector<4x32xf32>
    %48 = vector.extract_strided_slice %16 {offsets = [1, 0, 0], sizes = [1, 4, 128], strides = [1, 1, 1]} : vector<8x4x128xf32> to vector<1x4x128xf32>
    %49 = vector.shape_cast %48 : vector<1x4x128xf32> to vector<4x128xf32>
    %cst_24 = arith.constant dense<0.000000e+00> : vector<4x128xf32>
    %50 = tpu.matmul %47, %1, %cst_24 {dimension_numbers = #tpu.dot_dimension_numbers<[1], [0], [0], [1], [0, 0, 1, 1], [], []>} : vector<4x32xf32>, vector<32x128xf32>, vector<4x128xf32> -> vector<4x128xf32>
    %51 = arith.addf %49, %50 : vector<4x128xf32>
    %52 = vector.extract_strided_slice %51 {offsets = [0, 0], sizes = [4, 32], strides = [1, 1]} : vector<4x128xf32> to vector<4x32xf32>
    %53 = arith.negf %52 : vector<4x32xf32>
    %54 = math.exp %53 : vector<4x32xf32>
    %cst_25 = arith.constant 1.000000e+00 : f32
    %55 = vector.broadcast %cst_25 : f32 to vector<4x32xf32>
    %56 = arith.addf %55, %54 : vector<4x32xf32>
    %57 = arith.divf %55, %56 : vector<4x32xf32>
    %58 = vector.extract_strided_slice %51 {offsets = [0, 32], sizes = [4, 32], strides = [1, 1]} : vector<4x128xf32> to vector<4x32xf32>
    %59 = arith.negf %58 : vector<4x32xf32>
    %60 = math.exp %59 : vector<4x32xf32>
    %cst_26 = arith.constant 1.000000e+00 : f32
    %61 = vector.broadcast %cst_26 : f32 to vector<4x32xf32>
    %62 = arith.addf %61, %60 : vector<4x32xf32>
    %63 = arith.divf %61, %62 : vector<4x32xf32>
    %64 = vector.extract_strided_slice %51 {offsets = [0, 64], sizes = [4, 32], strides = [1, 1]} : vector<4x128xf32> to vector<4x32xf32>
    %65 = math.tanh %64 : vector<4x32xf32>
    %66 = vector.extract_strided_slice %51 {offsets = [0, 96], sizes = [4, 32], strides = [1, 1]} : vector<4x128xf32> to vector<4x32xf32>
    %67 = arith.negf %66 : vector<4x32xf32>
    %68 = math.exp %67 : vector<4x32xf32>
    %cst_27 = arith.constant 1.000000e+00 : f32
    %69 = vector.broadcast %cst_27 : f32 to vector<4x32xf32>
    %70 = arith.addf %69, %68 : vector<4x32xf32>
    %71 = arith.divf %69, %70 : vector<4x32xf32>
    %72 = arith.mulf %63, %45 : vector<4x32xf32>
    %73 = arith.mulf %57, %65 : vector<4x32xf32>
    %74 = arith.addf %72, %73 : vector<4x32xf32>
    %75 = math.tanh %74 : vector<4x32xf32>
    %76 = arith.mulf %71, %75 : vector<4x32xf32>
    %77 = vector.extract_strided_slice %16 {offsets = [2, 0, 0], sizes = [1, 4, 128], strides = [1, 1, 1]} : vector<8x4x128xf32> to vector<1x4x128xf32>
    %78 = vector.shape_cast %77 : vector<1x4x128xf32> to vector<4x128xf32>
    %cst_28 = arith.constant dense<0.000000e+00> : vector<4x128xf32>
    %79 = tpu.matmul %76, %1, %cst_28 {dimension_numbers = #tpu.dot_dimension_numbers<[1], [0], [0], [1], [0, 0, 1, 1], [], []>} : vector<4x32xf32>, vector<32x128xf32>, vector<4x128xf32> -> vector<4x128xf32>
    %80 = arith.addf %78, %79 : vector<4x128xf32>
    %81 = vector.extract_strided_slice %80 {offsets = [0, 0], sizes = [4, 32], strides = [1, 1]} : vector<4x128xf32> to vector<4x32xf32>
    %82 = arith.negf %81 : vector<4x32xf32>
    %83 = math.exp %82 : vector<4x32xf32>
    %cst_29 = arith.constant 1.000000e+00 : f32
    %84 = vector.broadcast %cst_29 : f32 to vector<4x32xf32>
    %85 = arith.addf %84, %83 : vector<4x32xf32>
    %86 = arith.divf %84, %85 : vector<4x32xf32>
    %87 = vector.extract_strided_slice %80 {offsets = [0, 32], sizes = [4, 32], strides = [1, 1]} : vector<4x128xf32> to vector<4x32xf32>
    %88 = arith.negf %87 : vector<4x32xf32>
    %89 = math.exp %88 : vector<4x32xf32>
    %cst_30 = arith.constant 1.000000e+00 : f32
    %90 = vector.broadcast %cst_30 : f32 to vector<4x32xf32>
    %91 = arith.addf %90, %89 : vector<4x32xf32>
    %92 = arith.divf %90, %91 : vector<4x32xf32>
    %93 = vector.extract_strided_slice %80 {offsets = [0, 64], sizes = [4, 32], strides = [1, 1]} : vector<4x128xf32> to vector<4x32xf32>
    %94 = math.tanh %93 : vector<4x32xf32>
    %95 = vector.extract_strided_slice %80 {offsets = [0, 96], sizes = [4, 32], strides = [1, 1]} : vector<4x128xf32> to vector<4x32xf32>
    %96 = arith.negf %95 : vector<4x32xf32>
    %97 = math.exp %96 : vector<4x32xf32>
    %cst_31 = arith.constant 1.000000e+00 : f32
    %98 = vector.broadcast %cst_31 : f32 to vector<4x32xf32>
    %99 = arith.addf %98, %97 : vector<4x32xf32>
    %100 = arith.divf %98, %99 : vector<4x32xf32>
    %101 = arith.mulf %92, %74 : vector<4x32xf32>
    %102 = arith.mulf %86, %94 : vector<4x32xf32>
    %103 = arith.addf %101, %102 : vector<4x32xf32>
    %104 = math.tanh %103 : vector<4x32xf32>
    %105 = arith.mulf %100, %104 : vector<4x32xf32>
    %106 = vector.extract_strided_slice %16 {offsets = [3, 0, 0], sizes = [1, 4, 128], strides = [1, 1, 1]} : vector<8x4x128xf32> to vector<1x4x128xf32>
    %107 = vector.shape_cast %106 : vector<1x4x128xf32> to vector<4x128xf32>
    %cst_32 = arith.constant dense<0.000000e+00> : vector<4x128xf32>
    %108 = tpu.matmul %105, %1, %cst_32 {dimension_numbers = #tpu.dot_dimension_numbers<[1], [0], [0], [1], [0, 0, 1, 1], [], []>} : vector<4x32xf32>, vector<32x128xf32>, vector<4x128xf32> -> vector<4x128xf32>
    %109 = arith.addf %107, %108 : vector<4x128xf32>
    %110 = vector.extract_strided_slice %109 {offsets = [0, 0], sizes = [4, 32], strides = [1, 1]} : vector<4x128xf32> to vector<4x32xf32>
    %111 = arith.negf %110 : vector<4x32xf32>
    %112 = math.exp %111 : vector<4x32xf32>
    %cst_33 = arith.constant 1.000000e+00 : f32
    %113 = vector.broadcast %cst_33 : f32 to vector<4x32xf32>
    %114 = arith.addf %113, %112 : vector<4x32xf32>
    %115 = arith.divf %113, %114 : vector<4x32xf32>
    %116 = vector.extract_strided_slice %109 {offsets = [0, 32], sizes = [4, 32], strides = [1, 1]} : vector<4x128xf32> to vector<4x32xf32>
    %117 = arith.negf %116 : vector<4x32xf32>
    %118 = math.exp %117 : vector<4x32xf32>
    %cst_34 = arith.constant 1.000000e+00 : f32
    %119 = vector.broadcast %cst_34 : f32 to vector<4x32xf32>
    %120 = arith.addf %119, %118 : vector<4x32xf32>
    %121 = arith.divf %119, %120 : vector<4x32xf32>
    %122 = vector.extract_strided_slice %109 {offsets = [0, 64], sizes = [4, 32], strides = [1, 1]} : vector<4x128xf32> to vector<4x32xf32>
    %123 = math.tanh %122 : vector<4x32xf32>
    %124 = vector.extract_strided_slice %109 {offsets = [0, 96], sizes = [4, 32], strides = [1, 1]} : vector<4x128xf32> to vector<4x32xf32>
    %125 = arith.negf %124 : vector<4x32xf32>
    %126 = math.exp %125 : vector<4x32xf32>
    %cst_35 = arith.constant 1.000000e+00 : f32
    %127 = vector.broadcast %cst_35 : f32 to vector<4x32xf32>
    %128 = arith.addf %127, %126 : vector<4x32xf32>
    %129 = arith.divf %127, %128 : vector<4x32xf32>
    %130 = arith.mulf %121, %103 : vector<4x32xf32>
    %131 = arith.mulf %115, %123 : vector<4x32xf32>
    %132 = arith.addf %130, %131 : vector<4x32xf32>
    %133 = math.tanh %132 : vector<4x32xf32>
    %134 = arith.mulf %129, %133 : vector<4x32xf32>
    %135 = vector.extract_strided_slice %16 {offsets = [4, 0, 0], sizes = [1, 4, 128], strides = [1, 1, 1]} : vector<8x4x128xf32> to vector<1x4x128xf32>
    %136 = vector.shape_cast %135 : vector<1x4x128xf32> to vector<4x128xf32>
    %cst_36 = arith.constant dense<0.000000e+00> : vector<4x128xf32>
    %137 = tpu.matmul %134, %1, %cst_36 {dimension_numbers = #tpu.dot_dimension_numbers<[1], [0], [0], [1], [0, 0, 1, 1], [], []>} : vector<4x32xf32>, vector<32x128xf32>, vector<4x128xf32> -> vector<4x128xf32>
    %138 = arith.addf %136, %137 : vector<4x128xf32>
    %139 = vector.extract_strided_slice %138 {offsets = [0, 0], sizes = [4, 32], strides = [1, 1]} : vector<4x128xf32> to vector<4x32xf32>
    %140 = arith.negf %139 : vector<4x32xf32>
    %141 = math.exp %140 : vector<4x32xf32>
    %cst_37 = arith.constant 1.000000e+00 : f32
    %142 = vector.broadcast %cst_37 : f32 to vector<4x32xf32>
    %143 = arith.addf %142, %141 : vector<4x32xf32>
    %144 = arith.divf %142, %143 : vector<4x32xf32>
    %145 = vector.extract_strided_slice %138 {offsets = [0, 32], sizes = [4, 32], strides = [1, 1]} : vector<4x128xf32> to vector<4x32xf32>
    %146 = arith.negf %145 : vector<4x32xf32>
    %147 = math.exp %146 : vector<4x32xf32>
    %cst_38 = arith.constant 1.000000e+00 : f32
    %148 = vector.broadcast %cst_38 : f32 to vector<4x32xf32>
    %149 = arith.addf %148, %147 : vector<4x32xf32>
    %150 = arith.divf %148, %149 : vector<4x32xf32>
    %151 = vector.extract_strided_slice %138 {offsets = [0, 64], sizes = [4, 32], strides = [1, 1]} : vector<4x128xf32> to vector<4x32xf32>
    %152 = math.tanh %151 : vector<4x32xf32>
    %153 = vector.extract_strided_slice %138 {offsets = [0, 96], sizes = [4, 32], strides = [1, 1]} : vector<4x128xf32> to vector<4x32xf32>
    %154 = arith.negf %153 : vector<4x32xf32>
    %155 = math.exp %154 : vector<4x32xf32>
    %cst_39 = arith.constant 1.000000e+00 : f32
    %156 = vector.broadcast %cst_39 : f32 to vector<4x32xf32>
    %157 = arith.addf %156, %155 : vector<4x32xf32>
    %158 = arith.divf %156, %157 : vector<4x32xf32>
    %159 = arith.mulf %150, %132 : vector<4x32xf32>
    %160 = arith.mulf %144, %152 : vector<4x32xf32>
    %161 = arith.addf %159, %160 : vector<4x32xf32>
    %162 = math.tanh %161 : vector<4x32xf32>
    %163 = arith.mulf %158, %162 : vector<4x32xf32>
    %164 = vector.extract_strided_slice %16 {offsets = [5, 0, 0], sizes = [1, 4, 128], strides = [1, 1, 1]} : vector<8x4x128xf32> to vector<1x4x128xf32>
    %165 = vector.shape_cast %164 : vector<1x4x128xf32> to vector<4x128xf32>
    %cst_40 = arith.constant dense<0.000000e+00> : vector<4x128xf32>
    %166 = tpu.matmul %163, %1, %cst_40 {dimension_numbers = #tpu.dot_dimension_numbers<[1], [0], [0], [1], [0, 0, 1, 1], [], []>} : vector<4x32xf32>, vector<32x128xf32>, vector<4x128xf32> -> vector<4x128xf32>
    %167 = arith.addf %165, %166 : vector<4x128xf32>
    %168 = vector.extract_strided_slice %167 {offsets = [0, 0], sizes = [4, 32], strides = [1, 1]} : vector<4x128xf32> to vector<4x32xf32>
    %169 = arith.negf %168 : vector<4x32xf32>
    %170 = math.exp %169 : vector<4x32xf32>
    %cst_41 = arith.constant 1.000000e+00 : f32
    %171 = vector.broadcast %cst_41 : f32 to vector<4x32xf32>
    %172 = arith.addf %171, %170 : vector<4x32xf32>
    %173 = arith.divf %171, %172 : vector<4x32xf32>
    %174 = vector.extract_strided_slice %167 {offsets = [0, 32], sizes = [4, 32], strides = [1, 1]} : vector<4x128xf32> to vector<4x32xf32>
    %175 = arith.negf %174 : vector<4x32xf32>
    %176 = math.exp %175 : vector<4x32xf32>
    %cst_42 = arith.constant 1.000000e+00 : f32
    %177 = vector.broadcast %cst_42 : f32 to vector<4x32xf32>
    %178 = arith.addf %177, %176 : vector<4x32xf32>
    %179 = arith.divf %177, %178 : vector<4x32xf32>
    %180 = vector.extract_strided_slice %167 {offsets = [0, 64], sizes = [4, 32], strides = [1, 1]} : vector<4x128xf32> to vector<4x32xf32>
    %181 = math.tanh %180 : vector<4x32xf32>
    %182 = vector.extract_strided_slice %167 {offsets = [0, 96], sizes = [4, 32], strides = [1, 1]} : vector<4x128xf32> to vector<4x32xf32>
    %183 = arith.negf %182 : vector<4x32xf32>
    %184 = math.exp %183 : vector<4x32xf32>
    %cst_43 = arith.constant 1.000000e+00 : f32
    %185 = vector.broadcast %cst_43 : f32 to vector<4x32xf32>
    %186 = arith.addf %185, %184 : vector<4x32xf32>
    %187 = arith.divf %185, %186 : vector<4x32xf32>
    %188 = arith.mulf %179, %161 : vector<4x32xf32>
    %189 = arith.mulf %173, %181 : vector<4x32xf32>
    %190 = arith.addf %188, %189 : vector<4x32xf32>
    %191 = math.tanh %190 : vector<4x32xf32>
    %192 = arith.mulf %187, %191 : vector<4x32xf32>
    %193 = vector.extract_strided_slice %16 {offsets = [6, 0, 0], sizes = [1, 4, 128], strides = [1, 1, 1]} : vector<8x4x128xf32> to vector<1x4x128xf32>
    %194 = vector.shape_cast %193 : vector<1x4x128xf32> to vector<4x128xf32>
    %cst_44 = arith.constant dense<0.000000e+00> : vector<4x128xf32>
    %195 = tpu.matmul %192, %1, %cst_44 {dimension_numbers = #tpu.dot_dimension_numbers<[1], [0], [0], [1], [0, 0, 1, 1], [], []>} : vector<4x32xf32>, vector<32x128xf32>, vector<4x128xf32> -> vector<4x128xf32>
    %196 = arith.addf %194, %195 : vector<4x128xf32>
    %197 = vector.extract_strided_slice %196 {offsets = [0, 0], sizes = [4, 32], strides = [1, 1]} : vector<4x128xf32> to vector<4x32xf32>
    %198 = arith.negf %197 : vector<4x32xf32>
    %199 = math.exp %198 : vector<4x32xf32>
    %cst_45 = arith.constant 1.000000e+00 : f32
    %200 = vector.broadcast %cst_45 : f32 to vector<4x32xf32>
    %201 = arith.addf %200, %199 : vector<4x32xf32>
    %202 = arith.divf %200, %201 : vector<4x32xf32>
    %203 = vector.extract_strided_slice %196 {offsets = [0, 32], sizes = [4, 32], strides = [1, 1]} : vector<4x128xf32> to vector<4x32xf32>
    %204 = arith.negf %203 : vector<4x32xf32>
    %205 = math.exp %204 : vector<4x32xf32>
    %cst_46 = arith.constant 1.000000e+00 : f32
    %206 = vector.broadcast %cst_46 : f32 to vector<4x32xf32>
    %207 = arith.addf %206, %205 : vector<4x32xf32>
    %208 = arith.divf %206, %207 : vector<4x32xf32>
    %209 = vector.extract_strided_slice %196 {offsets = [0, 64], sizes = [4, 32], strides = [1, 1]} : vector<4x128xf32> to vector<4x32xf32>
    %210 = math.tanh %209 : vector<4x32xf32>
    %211 = vector.extract_strided_slice %196 {offsets = [0, 96], sizes = [4, 32], strides = [1, 1]} : vector<4x128xf32> to vector<4x32xf32>
    %212 = arith.negf %211 : vector<4x32xf32>
    %213 = math.exp %212 : vector<4x32xf32>
    %cst_47 = arith.constant 1.000000e+00 : f32
    %214 = vector.broadcast %cst_47 : f32 to vector<4x32xf32>
    %215 = arith.addf %214, %213 : vector<4x32xf32>
    %216 = arith.divf %214, %215 : vector<4x32xf32>
    %217 = arith.mulf %208, %190 : vector<4x32xf32>
    %218 = arith.mulf %202, %210 : vector<4x32xf32>
    %219 = arith.addf %217, %218 : vector<4x32xf32>
    %220 = math.tanh %219 : vector<4x32xf32>
    %221 = arith.mulf %216, %220 : vector<4x32xf32>
    %222 = vector.extract_strided_slice %16 {offsets = [7, 0, 0], sizes = [1, 4, 128], strides = [1, 1, 1]} : vector<8x4x128xf32> to vector<1x4x128xf32>
    %223 = vector.shape_cast %222 : vector<1x4x128xf32> to vector<4x128xf32>
    %cst_48 = arith.constant dense<0.000000e+00> : vector<4x128xf32>
    %224 = tpu.matmul %221, %1, %cst_48 {dimension_numbers = #tpu.dot_dimension_numbers<[1], [0], [0], [1], [0, 0, 1, 1], [], []>} : vector<4x32xf32>, vector<32x128xf32>, vector<4x128xf32> -> vector<4x128xf32>
    %225 = arith.addf %223, %224 : vector<4x128xf32>
    %226 = vector.extract_strided_slice %225 {offsets = [0, 0], sizes = [4, 32], strides = [1, 1]} : vector<4x128xf32> to vector<4x32xf32>
    %227 = arith.negf %226 : vector<4x32xf32>
    %228 = math.exp %227 : vector<4x32xf32>
    %cst_49 = arith.constant 1.000000e+00 : f32
    %229 = vector.broadcast %cst_49 : f32 to vector<4x32xf32>
    %230 = arith.addf %229, %228 : vector<4x32xf32>
    %231 = arith.divf %229, %230 : vector<4x32xf32>
    %232 = vector.extract_strided_slice %225 {offsets = [0, 32], sizes = [4, 32], strides = [1, 1]} : vector<4x128xf32> to vector<4x32xf32>
    %233 = arith.negf %232 : vector<4x32xf32>
    %234 = math.exp %233 : vector<4x32xf32>
    %cst_50 = arith.constant 1.000000e+00 : f32
    %235 = vector.broadcast %cst_50 : f32 to vector<4x32xf32>
    %236 = arith.addf %235, %234 : vector<4x32xf32>
    %237 = arith.divf %235, %236 : vector<4x32xf32>
    %238 = vector.extract_strided_slice %225 {offsets = [0, 64], sizes = [4, 32], strides = [1, 1]} : vector<4x128xf32> to vector<4x32xf32>
    %239 = math.tanh %238 : vector<4x32xf32>
    %240 = vector.extract_strided_slice %225 {offsets = [0, 96], sizes = [4, 32], strides = [1, 1]} : vector<4x128xf32> to vector<4x32xf32>
    %241 = arith.negf %240 : vector<4x32xf32>
    %242 = math.exp %241 : vector<4x32xf32>
    %cst_51 = arith.constant 1.000000e+00 : f32
    %243 = vector.broadcast %cst_51 : f32 to vector<4x32xf32>
    %244 = arith.addf %243, %242 : vector<4x32xf32>
    %245 = arith.divf %243, %244 : vector<4x32xf32>
    %246 = arith.mulf %237, %219 : vector<4x32xf32>
    %247 = arith.mulf %231, %239 : vector<4x32xf32>
    %248 = arith.addf %246, %247 : vector<4x32xf32>
    %249 = math.tanh %248 : vector<4x32xf32>
    %250 = arith.mulf %245, %249 : vector<4x32xf32>
    %cst_52 = arith.constant dense<0.000000e+00> : vector<4x16xf32>
    %251 = tpu.matmul %250, %3, %cst_52 {dimension_numbers = #tpu.dot_dimension_numbers<[1], [0], [0], [1], [0, 0, 1, 1], [], []>} : vector<4x32xf32>, vector<32x16xf32>, vector<4x16xf32> -> vector<4x16xf32>
    %252 = vector.broadcast %4 : vector<1x16xf32> to vector<4x16xf32>
    %253 = arith.addf %251, %252 : vector<4x16xf32>
    %cst_53 = arith.constant dense<0.000000e+00> : vector<4x32xf32>
    %254 = tpu.matmul %253, %5, %cst_53 {dimension_numbers = #tpu.dot_dimension_numbers<[1], [0], [0], [1], [0, 0, 1, 1], [], []>} : vector<4x16xf32>, vector<16x32xf32>, vector<4x32xf32> -> vector<4x32xf32>
    %255 = vector.broadcast %6 : vector<1x32xf32> to vector<4x32xf32>
    %256 = arith.addf %254, %255 : vector<4x32xf32>
    %cst_54 = arith.constant 0.000000e+00 : f32
    %257 = vector.broadcast %cst_54 : f32 to vector<4x32xf32>
    %258 = arith.maximumf %256, %257 : vector<4x32xf32>
    %cst_55 = arith.constant dense<0.000000e+00> : vector<4x32xf32>
    %259 = tpu.matmul %258, %7, %cst_55 {dimension_numbers = #tpu.dot_dimension_numbers<[1], [0], [0], [1], [0, 0, 1, 1], [], []>} : vector<4x32xf32>, vector<32x32xf32>, vector<4x32xf32> -> vector<4x32xf32>
    %260 = vector.broadcast %9 : vector<1x32xf32> to vector<4x32xf32>
    %261 = arith.addf %259, %260 : vector<4x32xf32>
    %cst_56 = arith.constant 0.000000e+00 : f32
    %262 = vector.broadcast %cst_56 : f32 to vector<4x8xf32>
    %cst_57 = arith.constant 0.000000e+00 : f32
    %263 = vector.broadcast %cst_57 : f32 to vector<4x8xf32>
    %cst_58 = arith.constant dense<0.000000e+00> : vector<4x32xf32>
    %264 = tpu.matmul %262, %8, %cst_58 {dimension_numbers = #tpu.dot_dimension_numbers<[1], [0], [0], [1], [0, 0, 1, 1], [], []>} : vector<4x8xf32>, vector<8x32xf32>, vector<4x32xf32> -> vector<4x32xf32>
    %265 = arith.addf %261, %264 : vector<4x32xf32>
    %266 = vector.extract_strided_slice %265 {offsets = [0, 0], sizes = [4, 8], strides = [1, 1]} : vector<4x32xf32> to vector<4x8xf32>
    %267 = arith.negf %266 : vector<4x8xf32>
    %268 = math.exp %267 : vector<4x8xf32>
    %cst_59 = arith.constant 1.000000e+00 : f32
    %269 = vector.broadcast %cst_59 : f32 to vector<4x8xf32>
    %270 = arith.addf %269, %268 : vector<4x8xf32>
    %271 = arith.divf %269, %270 : vector<4x8xf32>
    %272 = vector.extract_strided_slice %265 {offsets = [0, 8], sizes = [4, 8], strides = [1, 1]} : vector<4x32xf32> to vector<4x8xf32>
    %273 = arith.negf %272 : vector<4x8xf32>
    %274 = math.exp %273 : vector<4x8xf32>
    %cst_60 = arith.constant 1.000000e+00 : f32
    %275 = vector.broadcast %cst_60 : f32 to vector<4x8xf32>
    %276 = arith.addf %275, %274 : vector<4x8xf32>
    %277 = arith.divf %275, %276 : vector<4x8xf32>
    %278 = vector.extract_strided_slice %265 {offsets = [0, 16], sizes = [4, 8], strides = [1, 1]} : vector<4x32xf32> to vector<4x8xf32>
    %279 = math.tanh %278 : vector<4x8xf32>
    %280 = vector.extract_strided_slice %265 {offsets = [0, 24], sizes = [4, 8], strides = [1, 1]} : vector<4x32xf32> to vector<4x8xf32>
    %281 = arith.negf %280 : vector<4x8xf32>
    %282 = math.exp %281 : vector<4x8xf32>
    %cst_61 = arith.constant 1.000000e+00 : f32
    %283 = vector.broadcast %cst_61 : f32 to vector<4x8xf32>
    %284 = arith.addf %283, %282 : vector<4x8xf32>
    %285 = arith.divf %283, %284 : vector<4x8xf32>
    %286 = arith.mulf %277, %263 : vector<4x8xf32>
    %287 = arith.mulf %271, %279 : vector<4x8xf32>
    %288 = arith.addf %286, %287 : vector<4x8xf32>
    %289 = math.tanh %288 : vector<4x8xf32>
    %290 = arith.mulf %285, %289 : vector<4x8xf32>
    %c0_62 = arith.constant 0 : index
    %c0_63 = arith.constant 0 : index
    %291 = vector.load %arg6[%c0_62, %c0_63] : memref<4x64xf32, #tpu.memory_space<vmem>>, vector<4x8xf32>
    tpu.vector_store %arg6[%c0_62, %c0_63], %290 {strides = array<i32>} : memref<4x64xf32, #tpu.memory_space<vmem>>, vector<4x8xf32>,
    %cst_64 = arith.constant dense<0.000000e+00> : vector<4x32xf32>
    %292 = tpu.matmul %290, %8, %cst_64 {dimension_numbers = #tpu.dot_dimension_numbers<[1], [0], [0], [1], [0, 0, 1, 1], [], []>} : vector<4x8xf32>, vector<8x32xf32>, vector<4x32xf32> -> vector<4x32xf32>
    %293 = arith.addf %261, %292 : vector<4x32xf32>
    %294 = vector.extract_strided_slice %293 {offsets = [0, 0], sizes = [4, 8], strides = [1, 1]} : vector<4x32xf32> to vector<4x8xf32>
    %295 = arith.negf %294 : vector<4x8xf32>
    %296 = math.exp %295 : vector<4x8xf32>
    %cst_65 = arith.constant 1.000000e+00 : f32
    %297 = vector.broadcast %cst_65 : f32 to vector<4x8xf32>
    %298 = arith.addf %297, %296 : vector<4x8xf32>
    %299 = arith.divf %297, %298 : vector<4x8xf32>
    %300 = vector.extract_strided_slice %293 {offsets = [0, 8], sizes = [4, 8], strides = [1, 1]} : vector<4x32xf32> to vector<4x8xf32>
    %301 = arith.negf %300 : vector<4x8xf32>
    %302 = math.exp %301 : vector<4x8xf32>
    %cst_66 = arith.constant 1.000000e+00 : f32
    %303 = vector.broadcast %cst_66 : f32 to vector<4x8xf32>
    %304 = arith.addf %303, %302 : vector<4x8xf32>
    %305 = arith.divf %303, %304 : vector<4x8xf32>
    %306 = vector.extract_strided_slice %293 {offsets = [0, 16], sizes = [4, 8], strides = [1, 1]} : vector<4x32xf32> to vector<4x8xf32>
    %307 = math.tanh %306 : vector<4x8xf32>
    %308 = vector.extract_strided_slice %293 {offsets = [0, 24], sizes = [4, 8], strides = [1, 1]} : vector<4x32xf32> to vector<4x8xf32>
    %309 = arith.negf %308 : vector<4x8xf32>
    %310 = math.exp %309 : vector<4x8xf32>
    %cst_67 = arith.constant 1.000000e+00 : f32
    %311 = vector.broadcast %cst_67 : f32 to vector<4x8xf32>
    %312 = arith.addf %311, %310 : vector<4x8xf32>
    %313 = arith.divf %311, %312 : vector<4x8xf32>
    %314 = arith.mulf %305, %288 : vector<4x8xf32>
    %315 = arith.mulf %299, %307 : vector<4x8xf32>
    %316 = arith.addf %314, %315 : vector<4x8xf32>
    %317 = math.tanh %316 : vector<4x8xf32>
    %318 = arith.mulf %313, %317 : vector<4x8xf32>
    %c0_68 = arith.constant 0 : index
    %c8_69 = arith.constant 8 : index
    %319 = vector.load %arg6[%c0_68, %c8_69] : memref<4x64xf32, #tpu.memory_space<vmem>>, vector<4x8xf32>
    tpu.vector_store %arg6[%c0_68, %c8_69], %318 {strides = array<i32>} : memref<4x64xf32, #tpu.memory_space<vmem>>, vector<4x8xf32>,
    %cst_70 = arith.constant dense<0.000000e+00> : vector<4x32xf32>
    %320 = tpu.matmul %318, %8, %cst_70 {dimension_numbers = #tpu.dot_dimension_numbers<[1], [0], [0], [1], [0, 0, 1, 1], [], []>} : vector<4x8xf32>, vector<8x32xf32>, vector<4x32xf32> -> vector<4x32xf32>
    %321 = arith.addf %261, %320 : vector<4x32xf32>
    %322 = vector.extract_strided_slice %321 {offsets = [0, 0], sizes = [4, 8], strides = [1, 1]} : vector<4x32xf32> to vector<4x8xf32>
    %323 = arith.negf %322 : vector<4x8xf32>
    %324 = math.exp %323 : vector<4x8xf32>
    %cst_71 = arith.constant 1.000000e+00 : f32
    %325 = vector.broadcast %cst_71 : f32 to vector<4x8xf32>
    %326 = arith.addf %325, %324 : vector<4x8xf32>
    %327 = arith.divf %325, %326 : vector<4x8xf32>
    %328 = vector.extract_strided_slice %321 {offsets = [0, 8], sizes = [4, 8], strides = [1, 1]} : vector<4x32xf32> to vector<4x8xf32>
    %329 = arith.negf %328 : vector<4x8xf32>
    %330 = math.exp %329 : vector<4x8xf32>
    %cst_72 = arith.constant 1.000000e+00 : f32
    %331 = vector.broadcast %cst_72 : f32 to vector<4x8xf32>
    %332 = arith.addf %331, %330 : vector<4x8xf32>
    %333 = arith.divf %331, %332 : vector<4x8xf32>
    %334 = vector.extract_strided_slice %321 {offsets = [0, 16], sizes = [4, 8], strides = [1, 1]} : vector<4x32xf32> to vector<4x8xf32>
    %335 = math.tanh %334 : vector<4x8xf32>
    %336 = vector.extract_strided_slice %321 {offsets = [0, 24], sizes = [4, 8], strides = [1, 1]} : vector<4x32xf32> to vector<4x8xf32>
    %337 = arith.negf %336 : vector<4x8xf32>
    %338 = math.exp %337 : vector<4x8xf32>
    %cst_73 = arith.constant 1.000000e+00 : f32
    %339 = vector.broadcast %cst_73 : f32 to vector<4x8xf32>
    %340 = arith.addf %339, %338 : vector<4x8xf32>
    %341 = arith.divf %339, %340 : vector<4x8xf32>
    %342 = arith.mulf %333, %316 : vector<4x8xf32>
    %343 = arith.mulf %327, %335 : vector<4x8xf32>
    %344 = arith.addf %342, %343 : vector<4x8xf32>
    %345 = math.tanh %344 : vector<4x8xf32>
    %346 = arith.mulf %341, %345 : vector<4x8xf32>
    %c0_74 = arith.constant 0 : index
    %c16_75 = arith.constant 16 : index
    %347 = vector.load %arg6[%c0_74, %c16_75] : memref<4x64xf32, #tpu.memory_space<vmem>>, vector<4x8xf32>
    tpu.vector_store %arg6[%c0_74, %c16_75], %346 {strides = array<i32>} : memref<4x64xf32, #tpu.memory_space<vmem>>, vector<4x8xf32>,
    %cst_76 = arith.constant dense<0.000000e+00> : vector<4x32xf32>
    %348 = tpu.matmul %346, %8, %cst_76 {dimension_numbers = #tpu.dot_dimension_numbers<[1], [0], [0], [1], [0, 0, 1, 1], [], []>} : vector<4x8xf32>, vector<8x32xf32>, vector<4x32xf32> -> vector<4x32xf32>
    %349 = arith.addf %261, %348 : vector<4x32xf32>
    %350 = vector.extract_strided_slice %349 {offsets = [0, 0], sizes = [4, 8], strides = [1, 1]} : vector<4x32xf32> to vector<4x8xf32>
    %351 = arith.negf %350 : vector<4x8xf32>
    %352 = math.exp %351 : vector<4x8xf32>
    %cst_77 = arith.constant 1.000000e+00 : f32
    %353 = vector.broadcast %cst_77 : f32 to vector<4x8xf32>
    %354 = arith.addf %353, %352 : vector<4x8xf32>
    %355 = arith.divf %353, %354 : vector<4x8xf32>
    %356 = vector.extract_strided_slice %349 {offsets = [0, 8], sizes = [4, 8], strides = [1, 1]} : vector<4x32xf32> to vector<4x8xf32>
    %357 = arith.negf %356 : vector<4x8xf32>
    %358 = math.exp %357 : vector<4x8xf32>
    %cst_78 = arith.constant 1.000000e+00 : f32
    %359 = vector.broadcast %cst_78 : f32 to vector<4x8xf32>
    %360 = arith.addf %359, %358 : vector<4x8xf32>
    %361 = arith.divf %359, %360 : vector<4x8xf32>
    %362 = vector.extract_strided_slice %349 {offsets = [0, 16], sizes = [4, 8], strides = [1, 1]} : vector<4x32xf32> to vector<4x8xf32>
    %363 = math.tanh %362 : vector<4x8xf32>
    %364 = vector.extract_strided_slice %349 {offsets = [0, 24], sizes = [4, 8], strides = [1, 1]} : vector<4x32xf32> to vector<4x8xf32>
    %365 = arith.negf %364 : vector<4x8xf32>
    %366 = math.exp %365 : vector<4x8xf32>
    %cst_79 = arith.constant 1.000000e+00 : f32
    %367 = vector.broadcast %cst_79 : f32 to vector<4x8xf32>
    %368 = arith.addf %367, %366 : vector<4x8xf32>
    %369 = arith.divf %367, %368 : vector<4x8xf32>
    %370 = arith.mulf %361, %344 : vector<4x8xf32>
    %371 = arith.mulf %355, %363 : vector<4x8xf32>
    %372 = arith.addf %370, %371 : vector<4x8xf32>
    %373 = math.tanh %372 : vector<4x8xf32>
    %374 = arith.mulf %369, %373 : vector<4x8xf32>
    %c0_80 = arith.constant 0 : index
    %c24 = arith.constant 24 : index
    %375 = vector.load %arg6[%c0_80, %c24] : memref<4x64xf32, #tpu.memory_space<vmem>>, vector<4x8xf32>
    tpu.vector_store %arg6[%c0_80, %c24], %374 {strides = array<i32>} : memref<4x64xf32, #tpu.memory_space<vmem>>, vector<4x8xf32>,
    %cst_81 = arith.constant dense<0.000000e+00> : vector<4x32xf32>
    %376 = tpu.matmul %374, %8, %cst_81 {dimension_numbers = #tpu.dot_dimension_numbers<[1], [0], [0], [1], [0, 0, 1, 1], [], []>} : vector<4x8xf32>, vector<8x32xf32>, vector<4x32xf32> -> vector<4x32xf32>
    %377 = arith.addf %261, %376 : vector<4x32xf32>
    %378 = vector.extract_strided_slice %377 {offsets = [0, 0], sizes = [4, 8], strides = [1, 1]} : vector<4x32xf32> to vector<4x8xf32>
    %379 = arith.negf %378 : vector<4x8xf32>
    %380 = math.exp %379 : vector<4x8xf32>
    %cst_82 = arith.constant 1.000000e+00 : f32
    %381 = vector.broadcast %cst_82 : f32 to vector<4x8xf32>
    %382 = arith.addf %381, %380 : vector<4x8xf32>
    %383 = arith.divf %381, %382 : vector<4x8xf32>
    %384 = vector.extract_strided_slice %377 {offsets = [0, 8], sizes = [4, 8], strides = [1, 1]} : vector<4x32xf32> to vector<4x8xf32>
    %385 = arith.negf %384 : vector<4x8xf32>
    %386 = math.exp %385 : vector<4x8xf32>
    %cst_83 = arith.constant 1.000000e+00 : f32
    %387 = vector.broadcast %cst_83 : f32 to vector<4x8xf32>
    %388 = arith.addf %387, %386 : vector<4x8xf32>
    %389 = arith.divf %387, %388 : vector<4x8xf32>
    %390 = vector.extract_strided_slice %377 {offsets = [0, 16], sizes = [4, 8], strides = [1, 1]} : vector<4x32xf32> to vector<4x8xf32>
    %391 = math.tanh %390 : vector<4x8xf32>
    %392 = vector.extract_strided_slice %377 {offsets = [0, 24], sizes = [4, 8], strides = [1, 1]} : vector<4x32xf32> to vector<4x8xf32>
    %393 = arith.negf %392 : vector<4x8xf32>
    %394 = math.exp %393 : vector<4x8xf32>
    %cst_84 = arith.constant 1.000000e+00 : f32
    %395 = vector.broadcast %cst_84 : f32 to vector<4x8xf32>
    %396 = arith.addf %395, %394 : vector<4x8xf32>
    %397 = arith.divf %395, %396 : vector<4x8xf32>
    %398 = arith.mulf %389, %372 : vector<4x8xf32>
    %399 = arith.mulf %383, %391 : vector<4x8xf32>
    %400 = arith.addf %398, %399 : vector<4x8xf32>
    %401 = math.tanh %400 : vector<4x8xf32>
    %402 = arith.mulf %397, %401 : vector<4x8xf32>
    %c0_85 = arith.constant 0 : index
    %c32_86 = arith.constant 32 : index
    %403 = vector.load %arg6[%c0_85, %c32_86] : memref<4x64xf32, #tpu.memory_space<vmem>>, vector<4x8xf32>
    tpu.vector_store %arg6[%c0_85, %c32_86], %402 {strides = array<i32>} : memref<4x64xf32, #tpu.memory_space<vmem>>, vector<4x8xf32>,
    %cst_87 = arith.constant dense<0.000000e+00> : vector<4x32xf32>
    %404 = tpu.matmul %402, %8, %cst_87 {dimension_numbers = #tpu.dot_dimension_numbers<[1], [0], [0], [1], [0, 0, 1, 1], [], []>} : vector<4x8xf32>, vector<8x32xf32>, vector<4x32xf32> -> vector<4x32xf32>
    %405 = arith.addf %261, %404 : vector<4x32xf32>
    %406 = vector.extract_strided_slice %405 {offsets = [0, 0], sizes = [4, 8], strides = [1, 1]} : vector<4x32xf32> to vector<4x8xf32>
    %407 = arith.negf %406 : vector<4x8xf32>
    %408 = math.exp %407 : vector<4x8xf32>
    %cst_88 = arith.constant 1.000000e+00 : f32
    %409 = vector.broadcast %cst_88 : f32 to vector<4x8xf32>
    %410 = arith.addf %409, %408 : vector<4x8xf32>
    %411 = arith.divf %409, %410 : vector<4x8xf32>
    %412 = vector.extract_strided_slice %405 {offsets = [0, 8], sizes = [4, 8], strides = [1, 1]} : vector<4x32xf32> to vector<4x8xf32>
    %413 = arith.negf %412 : vector<4x8xf32>
    %414 = math.exp %413 : vector<4x8xf32>
    %cst_89 = arith.constant 1.000000e+00 : f32
    %415 = vector.broadcast %cst_89 : f32 to vector<4x8xf32>
    %416 = arith.addf %415, %414 : vector<4x8xf32>
    %417 = arith.divf %415, %416 : vector<4x8xf32>
    %418 = vector.extract_strided_slice %405 {offsets = [0, 16], sizes = [4, 8], strides = [1, 1]} : vector<4x32xf32> to vector<4x8xf32>
    %419 = math.tanh %418 : vector<4x8xf32>
    %420 = vector.extract_strided_slice %405 {offsets = [0, 24], sizes = [4, 8], strides = [1, 1]} : vector<4x32xf32> to vector<4x8xf32>
    %421 = arith.negf %420 : vector<4x8xf32>
    %422 = math.exp %421 : vector<4x8xf32>
    %cst_90 = arith.constant 1.000000e+00 : f32
    %423 = vector.broadcast %cst_90 : f32 to vector<4x8xf32>
    %424 = arith.addf %423, %422 : vector<4x8xf32>
    %425 = arith.divf %423, %424 : vector<4x8xf32>
    %426 = arith.mulf %417, %400 : vector<4x8xf32>
    %427 = arith.mulf %411, %419 : vector<4x8xf32>
    %428 = arith.addf %426, %427 : vector<4x8xf32>
    %429 = math.tanh %428 : vector<4x8xf32>
    %430 = arith.mulf %425, %429 : vector<4x8xf32>
    %c0_91 = arith.constant 0 : index
    %c40_92 = arith.constant 40 : index
    %431 = vector.load %arg6[%c0_91, %c40_92] : memref<4x64xf32, #tpu.memory_space<vmem>>, vector<4x8xf32>
    tpu.vector_store %arg6[%c0_91, %c40_92], %430 {strides = array<i32>} : memref<4x64xf32, #tpu.memory_space<vmem>>, vector<4x8xf32>,
    %cst_93 = arith.constant dense<0.000000e+00> : vector<4x32xf32>
    %432 = tpu.matmul %430, %8, %cst_93 {dimension_numbers = #tpu.dot_dimension_numbers<[1], [0], [0], [1], [0, 0, 1, 1], [], []>} : vector<4x8xf32>, vector<8x32xf32>, vector<4x32xf32> -> vector<4x32xf32>
    %433 = arith.addf %261, %432 : vector<4x32xf32>
    %434 = vector.extract_strided_slice %433 {offsets = [0, 0], sizes = [4, 8], strides = [1, 1]} : vector<4x32xf32> to vector<4x8xf32>
    %435 = arith.negf %434 : vector<4x8xf32>
    %436 = math.exp %435 : vector<4x8xf32>
    %cst_94 = arith.constant 1.000000e+00 : f32
    %437 = vector.broadcast %cst_94 : f32 to vector<4x8xf32>
    %438 = arith.addf %437, %436 : vector<4x8xf32>
    %439 = arith.divf %437, %438 : vector<4x8xf32>
    %440 = vector.extract_strided_slice %433 {offsets = [0, 8], sizes = [4, 8], strides = [1, 1]} : vector<4x32xf32> to vector<4x8xf32>
    %441 = arith.negf %440 : vector<4x8xf32>
    %442 = math.exp %441 : vector<4x8xf32>
    %cst_95 = arith.constant 1.000000e+00 : f32
    %443 = vector.broadcast %cst_95 : f32 to vector<4x8xf32>
    %444 = arith.addf %443, %442 : vector<4x8xf32>
    %445 = arith.divf %443, %444 : vector<4x8xf32>
    %446 = vector.extract_strided_slice %433 {offsets = [0, 16], sizes = [4, 8], strides = [1, 1]} : vector<4x32xf32> to vector<4x8xf32>
    %447 = math.tanh %446 : vector<4x8xf32>
    %448 = vector.extract_strided_slice %433 {offsets = [0, 24], sizes = [4, 8], strides = [1, 1]} : vector<4x32xf32> to vector<4x8xf32>
    %449 = arith.negf %448 : vector<4x8xf32>
    %450 = math.exp %449 : vector<4x8xf32>
    %cst_96 = arith.constant 1.000000e+00 : f32
    %451 = vector.broadcast %cst_96 : f32 to vector<4x8xf32>
    %452 = arith.addf %451, %450 : vector<4x8xf32>
    %453 = arith.divf %451, %452 : vector<4x8xf32>
    %454 = arith.mulf %445, %428 : vector<4x8xf32>
    %455 = arith.mulf %439, %447 : vector<4x8xf32>
    %456 = arith.addf %454, %455 : vector<4x8xf32>
    %457 = math.tanh %456 : vector<4x8xf32>
    %458 = arith.mulf %453, %457 : vector<4x8xf32>
    %c0_97 = arith.constant 0 : index
    %c48 = arith.constant 48 : index
    %459 = vector.load %arg6[%c0_97, %c48] : memref<4x64xf32, #tpu.memory_space<vmem>>, vector<4x8xf32>
    tpu.vector_store %arg6[%c0_97, %c48], %458 {strides = array<i32>} : memref<4x64xf32, #tpu.memory_space<vmem>>, vector<4x8xf32>,
    %cst_98 = arith.constant dense<0.000000e+00> : vector<4x32xf32>
    %460 = tpu.matmul %458, %8, %cst_98 {dimension_numbers = #tpu.dot_dimension_numbers<[1], [0], [0], [1], [0, 0, 1, 1], [], []>} : vector<4x8xf32>, vector<8x32xf32>, vector<4x32xf32> -> vector<4x32xf32>
    %461 = arith.addf %261, %460 : vector<4x32xf32>
    %462 = vector.extract_strided_slice %461 {offsets = [0, 0], sizes = [4, 8], strides = [1, 1]} : vector<4x32xf32> to vector<4x8xf32>
    %463 = arith.negf %462 : vector<4x8xf32>
    %464 = math.exp %463 : vector<4x8xf32>
    %cst_99 = arith.constant 1.000000e+00 : f32
    %465 = vector.broadcast %cst_99 : f32 to vector<4x8xf32>
    %466 = arith.addf %465, %464 : vector<4x8xf32>
    %467 = arith.divf %465, %466 : vector<4x8xf32>
    %468 = vector.extract_strided_slice %461 {offsets = [0, 8], sizes = [4, 8], strides = [1, 1]} : vector<4x32xf32> to vector<4x8xf32>
    %469 = arith.negf %468 : vector<4x8xf32>
    %470 = math.exp %469 : vector<4x8xf32>
    %cst_100 = arith.constant 1.000000e+00 : f32
    %471 = vector.broadcast %cst_100 : f32 to vector<4x8xf32>
    %472 = arith.addf %471, %470 : vector<4x8xf32>
    %473 = arith.divf %471, %472 : vector<4x8xf32>
    %474 = vector.extract_strided_slice %461 {offsets = [0, 16], sizes = [4, 8], strides = [1, 1]} : vector<4x32xf32> to vector<4x8xf32>
    %475 = math.tanh %474 : vector<4x8xf32>
    %476 = vector.extract_strided_slice %461 {offsets = [0, 24], sizes = [4, 8], strides = [1, 1]} : vector<4x32xf32> to vector<4x8xf32>
    %477 = arith.negf %476 : vector<4x8xf32>
    %478 = math.exp %477 : vector<4x8xf32>
    %cst_101 = arith.constant 1.000000e+00 : f32
    %479 = vector.broadcast %cst_101 : f32 to vector<4x8xf32>
    %480 = arith.addf %479, %478 : vector<4x8xf32>
    %481 = arith.divf %479, %480 : vector<4x8xf32>
    %482 = arith.mulf %473, %456 : vector<4x8xf32>
    %483 = arith.mulf %467, %475 : vector<4x8xf32>
    %484 = arith.addf %482, %483 : vector<4x8xf32>
    %485 = math.tanh %484 : vector<4x8xf32>
    %486 = arith.mulf %481, %485 : vector<4x8xf32>
    %c0_102 = arith.constant 0 : index
    %c56 = arith.constant 56 : index
    %487 = vector.load %arg6[%c0_102, %c56] : memref<4x64xf32, #tpu.memory_space<vmem>>, vector<4x8xf32>
    tpu.vector_store %arg6[%c0_102, %c56], %486 {strides = array<i32>} : memref<4x64xf32, #tpu.memory_space<vmem>>, vector<4x8xf32>,
    return
  }
  func.func @transform_0(%arg0: i32) -> (i32, i32, i32) {
    %c0_i32 = arith.constant 0 : i32
    %c0_i32_0 = arith.constant 0 : i32
    %c0_i32_1 = arith.constant 0 : i32
    return %arg0, %c0_i32, %c0_i32_0 : i32, i32, i32
  }
  func.func @transform_1(%arg0: i32) -> (i32, i32) {
    %c0_i32 = arith.constant 0 : i32
    %c0_i32_0 = arith.constant 0 : i32
    %c0_i32_1 = arith.constant 0 : i32
    return %c0_i32, %c0_i32_0 : i32, i32
  }
  func.func @transform_2(%arg0: i32) -> (i32, i32) {
    %c0_i32 = arith.constant 0 : i32
    %c0_i32_0 = arith.constant 0 : i32
    %c0_i32_1 = arith.constant 0 : i32
    return %c0_i32, %c0_i32_0 : i32, i32
  }
  func.func @transform_3(%arg0: i32) -> (i32, i32) {
    %c0_i32 = arith.constant 0 : i32
    %c0_i32_0 = arith.constant 0 : i32
    %c0_i32_1 = arith.constant 0 : i32
    return %c0_i32, %c0_i32_0 : i32, i32
  }
  func.func @transform_4(%arg0: i32) -> (i32, i32) {
    %c0_i32 = arith.constant 0 : i32
    %c0_i32_0 = arith.constant 0 : i32
    %c0_i32_1 = arith.constant 0 : i32
    return %c0_i32, %c0_i32_0 : i32, i32
  }
  func.func @transform_5(%arg0: i32) -> (i32, i32) {
    %c0_i32 = arith.constant 0 : i32
    %c0_i32_0 = arith.constant 0 : i32
    return %arg0, %c0_i32 : i32, i32
  }
}

</mosaic_0001>

<llo_original>
// kernel: lstm_autoencoder_forward.1
$region0: #{lstm_autoencoder_forward.1}
  #allocation0 [shape = 'u32[]', space=smem, size = 0x4, offset = 0x4, fixed_abs, tag = 'smem constant byte address 0x4 - core index']
  #allocation1 [shape = 'u32[144,128]{1,0:T(1,128)}', space=vmem, size = 0x12000, scoped, tag = 'internal scratch']
  %s0 = inlined_call_operand.vmem [shape: f32[4,8,8], index: 0, kind: input, shape index: {}]
  %s1 = inlined_call_operand.vmem [shape: f32[48,128], index: 1, kind: input, shape index: {}]
  %s2 = inlined_call_operand.vmem [shape: f32[40,16], index: 2, kind: input, shape index: {}]
  %s3 = inlined_call_operand.vmem [shape: f32[24,32], index: 3, kind: input, shape index: {}]
  %s4 = inlined_call_operand.vmem [shape: f32[48,32], index: 4, kind: input, shape index: {}]
  %s5 = inlined_call_operand.vmem [shape: f32[4,64], index: 5, kind: output, shape index: {}]
  %s6 = sld [smem:[#allocation0]]
  $region30: #{lstm_autoencoder_forward.1} parent=0
    _
  %s8 = ssub.s32 1, %s6
  %s9 = scalar_select 0, %s8, %s6
  // Predicated region
  $region2: #{lstm_autoencoder_forward.1} parent=0 // pred_check
    _
  $region3: #{lstm_autoencoder_forward.1} parent=0 // pred_check_branch
    %11 = sbr.rel (0) target = $region5
  $region4: #{lstm_autoencoder_forward.1} parent=0 // pred_region
    _
  $region5: #{lstm_autoencoder_forward.1} parent=0 // pred_fallthru
    _
  // Predicated region
  $region6: #{lstm_autoencoder_forward.1} parent=0 // pred_check
    _
  $region7: #{lstm_autoencoder_forward.1} parent=0 // pred_check_branch
    %13 = sbr.rel (0) target = $region9
  $region8: #{lstm_autoencoder_forward.1} parent=0 // pred_region
    _
  $region9: #{lstm_autoencoder_forward.1} parent=0 // pred_fallthru
    _
  // Predicated region
  $region10: #{lstm_autoencoder_forward.1} parent=0 // pred_check
    _
  $region11: #{lstm_autoencoder_forward.1} parent=0 // pred_check_branch
    %15 = sbr.rel (0) target = $region13
  $region12: #{lstm_autoencoder_forward.1} parent=0 // pred_region
    _
  $region13: #{lstm_autoencoder_forward.1} parent=0 // pred_fallthru
    _
  // Predicated region
  $region14: #{lstm_autoencoder_forward.1} parent=0 // pred_check
    _
  $region15: #{lstm_autoencoder_forward.1} parent=0 // pred_check_branch
    %17 = sbr.rel (0) target = $region17
  $region16: #{lstm_autoencoder_forward.1} parent=0 // pred_region
    _
  $region17: #{lstm_autoencoder_forward.1} parent=0 // pred_fallthru
    _
  // Predicated region
  $region18: #{lstm_autoencoder_forward.1} parent=0 // pred_check
    _
  $region19: #{lstm_autoencoder_forward.1} parent=0 // pred_check_branch
    %19 = sbr.rel (0) target = $region21
  $region20: #{lstm_autoencoder_forward.1} parent=0 // pred_region
    _
  $region21: #{lstm_autoencoder_forward.1} parent=0 // pred_fallthru
    _
  %v20 = vld [vmem:[%s1] sm:$0xff]
  %v21 = vld [vmem:[%s1 + $0x8] sm:$0xff]
  %v22 = vld [vmem:[%s1 + $0x10] sm:$0xff]
  %v23 = vld [vmem:[%s1 + $0x18] sm:$0xff]
  %v24 = vld [vmem:[%s1 + $0x20] sm:$0xff]
  %v25 = vld [vmem:[%s1 + $0x28] sm:$0x1]
  %v26 = vld [vmem:[%s2] sm:$0xff]
  %v27 = vld [vmem:[%s2 + $0x8] sm:$0xff]
  %v28 = vld [vmem:[%s2 + $0x10] sm:$0xff]
  %v29 = vld [vmem:[%s2 + $0x18] sm:$0xff]
  %v30 = vld [vmem:[%s2 + $0x20] sm:$0x1]
  %v31 = vld [vmem:[%s3] sm:$0xff]
  %v32 = vld [vmem:[%s3 + $0x8] sm:$0xff]
  %v33 = vld [vmem:[%s3 + $0x10] sm:$0x1]
  %v34 = vld [vmem:[%s4] sm:$0xff]
  %v35 = vld [vmem:[%s4 + $0x8] sm:$0xff]
  %v36 = vld [vmem:[%s4 + $0x10] sm:$0xff]
  %v37 = vld [vmem:[%s4 + $0x18] sm:$0xff]
  %v38 = vld [vmem:[%s4 + $0x20] sm:$0xff]
  %v39 = vld [vmem:[%s4 + $0x28] sm:$0x1]
  %v40 = vld [vmem:[%s0] sm:$0xff]
  %v41 = vld [vmem:[%s0 + $0x8] sm:$0xff]
  %v42 = vld [vmem:[%s0 + $0x10] sm:$0xff]
  %v43 = vld [vmem:[%s0 + $0x18] sm:$0xff]
  %v44 = vcombine.low %v40, %v42
  %v45 = vcombine.high %v40, %v42
  %v47 = vunpack.c.l.s4 1983009808
  %v48 = vunpack.c.0.s8 %v47
  %v49 = vlaneseq
  %v50 = vshrl.u32 %v49, 7
  %v51 = vsub.s32 %v48, %v50
  %v52 = vrot.slane %v44, %v51
  %v54 = vunpack.c.l.s4 1983009808
  %v55 = vunpack.c.0.s8 %v54
  %v56 = vlaneseq
  %v57 = vshrl.u32 %v56, 7
  %v58 = vsub.s32 %v55, %v57
  %v59 = vrot.slane %v45, %v58
  %v60 = vcombine.low %v41, %v43
  %v61 = vcombine.high %v41, %v43
  %v63 = vunpack.c.l.s4 1983009808
  %v64 = vunpack.c.0.s8 %v63
  %v65 = vlaneseq
  %v66 = vshrl.u32 %v65, 7
  %v67 = vsub.s32 %v64, %v66
  %v68 = vrot.slane %v60, %v67
  %v70 = vunpack.c.l.s4 1983009808
  %v71 = vunpack.c.0.s8 %v70
  %v72 = vlaneseq
  %v73 = vshrl.u32 %v72, 7
  %v74 = vsub.s32 %v71, %v73
  %v75 = vrot.slane %v61, %v74
  %v76 = vcombine.low %v52, %v68
  %v77 = vcombine.high %v52, %v68
  %v79 = vunpack.c.l.s4 1934713408
  %v80 = vunpack.c.0.s8 %v79
  %v81 = vlaneseq
  %v82 = vshrl.u32 %v81, 7
  %v83 = vsub.s32 %v80, %v82
  %v84 = vrot.slane %v76, %v83
  %v86 = vunpack.c.l.s4 1934713408
  %v87 = vunpack.c.0.s8 %v86
  %v88 = vlaneseq
  %v89 = vshrl.u32 %v88, 7
  %v90 = vsub.s32 %v87, %v89
  %v91 = vrot.slane %v77, %v90
  %v92 = vcombine.low %v59, %v75
  %v93 = vcombine.high %v59, %v75
  %v95 = vunpack.c.l.s4 1934713408
  %v96 = vunpack.c.0.s8 %v95
  %v97 = vlaneseq
  %v98 = vshrl.u32 %v97, 7
  %v99 = vsub.s32 %v96, %v98
  %v100 = vrot.slane %v92, %v99
  %v102 = vunpack.c.l.s4 1934713408
  %v103 = vunpack.c.0.s8 %v102
  %v104 = vlaneseq
  %v105 = vshrl.u32 %v104, 7
  %v106 = vsub.s32 %v103, %v105
  %v107 = vrot.slane %v93, %v106
  %v108 = vcombine.high %v84, 0.0
  %v109 = vcombine.high %v91, 0.0
  %v110 = vcombine.high %v100, 0.0
  %v111 = vcombine.high %v107, 0.0
  %v112 = vlaneseq
  %v113 = vshrl.u32 %v112, 7
  %v114 = vsub.s32 0, %v113
  %v115 = vrot.slane %v25, %v114
  %v124 = vcombine.low %v84, %v108
  %v125 = vcombine.low %v91, %v109
  %v126 = vcombine.low %v100, %v110
  %v127 = vcombine.low %v107, %v111
  %vm128 = vcmask 64512
  %v129 = vsel %vm128, %v124, 0
  %v131 = vsel %vm128, %v125, 0
  %v133 = vsel %vm128, %v126, 0
  %v135 = vsel %vm128, %v127, 0
  %137 = vmatprep.subr.mxu0 0.0
  %138 = vmatpush1.msra.mxu0 0.0
  %139 = vmatprep.subr.mxu0 0.0
  %140 = vmatpush1.msra.mxu0 0.0
  %141 = vmatprep.subr.mxu0 0.0
  %142 = vmatpush1.msra.mxu0 0.0
  %143 = vmatprep.subr.mxu0 0.0
  %144 = vmatpush1.msra.mxu0 0.0
  %145 = vmatprep.subr.mxu0 0.0
  %146 = vmatpush1.msra.mxu0 0.0
  %147 = vmatprep.subr.mxu0 0.0
  %148 = vmatpush1.msra.mxu0 0.0
  %149 = vmatprep.subr.mxu0 0.0
  %150 = vmatpush1.msra.mxu0 0.0
  %151 = vmatprep.subr.mxu0 0.0
  %152 = vmatpush1.msra.mxu0 0.0
  %153 = vmatprep.subr.mxu0 0.0
  %154 = vmatpush1.msra.mxu0 0.0
  %155 = vmatprep.subr.mxu0 0.0
  %156 = vmatpush1.msra.mxu0 0.0
  %157 = vmatprep.subr.mxu0 0.0
  %158 = vmatpush1.msra.mxu0 0.0
  %159 = vmatprep.subr.mxu0 0.0
  %160 = vmatpush1.msra.mxu0 0.0
  %161 = vmatprep.subr.mxu0 0.0
  %162 = vmatpush1.msra.mxu0 0.0
  %163 = vmatprep.subr.mxu0 0.0
  %164 = vmatpush1.msra.mxu0 0.0
  %165 = vmatprep.subr.mxu0 0.0
  %166 = vmatpush1.msra.mxu0 0.0
  %167 = vmatprep.subr.mxu0 0.0
  %168 = vmatpush1.msra.mxu0 %v20
  %169 = vmatprep.subr.mxu0 0.0
  %170 = vmatpush2.msra.mxu0 0.0
  %171 = vmatprep.subr.mxu0 0.0
  %172 = vmatpush2.msra.mxu0 0.0
  %173 = vmatprep.subr.mxu0 0.0
  %174 = vmatpush2.msra.mxu0 0.0
  %175 = vmatprep.subr.mxu0 0.0
  %176 = vmatpush2.msra.mxu0 0.0
  %177 = vmatprep.subr.mxu0 0.0
  %178 = vmatpush2.msra.mxu0 0.0
  %179 = vmatprep.subr.mxu0 0.0
  %180 = vmatpush2.msra.mxu0 0.0
  %181 = vmatprep.subr.mxu0 0.0
  %182 = vmatpush2.msra.mxu0 0.0
  %183 = vmatprep.subr.mxu0 0.0
  %184 = vmatpush2.msra.mxu0 0.0
  %185 = vmatprep.subr.mxu0 0.0
  %186 = vmatpush2.msra.mxu0 0.0
  %187 = vmatprep.subr.mxu0 0.0
  %188 = vmatpush2.msra.mxu0 0.0
  %189 = vmatprep.subr.mxu0 0.0
  %190 = vmatpush2.msra.mxu0 0.0
  %191 = vmatprep.subr.mxu0 0.0
  %192 = vmatpush2.msra.mxu0 0.0
  %193 = vmatprep.subr.mxu0 0.0
  %194 = vmatpush2.msra.mxu0 0.0
  %195 = vmatprep.subr.mxu0 0.0
  %196 = vmatpush2.msra.mxu0 0.0
  %197 = vmatprep.subr.mxu0 0.0
  %198 = vmatpush2.msra.mxu0 0.0
  %199 = vmatprep.subr.mxu0 0.0
  %200 = vmatpush2.msra.mxu0 0.0
  %201 = vmatprep.mubr.f32.mxu0 0.0
  %202 = vmatmul.mubr.f32.gmra.mxu0 %v129
  %v203 = vpop.f32.mrf.mxu0
  %v204 = vadd.f32 %v115, %v203
  %v205 = vpop.f32.mrf.mxu0
  %206 = vmatprep.mubr.f32.mxu0 0.0
  %207 = vmatmul.mubr.f32.gmra.mxu0 %v131
  %v208 = vpop.f32.mrf.mxu0
  %v209 = vadd.f32 %v115, %v208
  %v210 = vpop.f32.mrf.mxu0
  %211 = vmatprep.mubr.f32.mxu0 0.0
  %212 = vmatmul.mubr.f32.gmra.mxu0 %v133
  %v213 = vpop.f32.mrf.mxu0
  %v214 = vadd.f32 %v115, %v213
  %v215 = vpop.f32.mrf.mxu0
  %216 = vmatprep.mubr.f32.mxu0 0.0
  %217 = vmatmul.mubr.f32.gmra.mxu0 %v135
  %v218 = vpop.f32.mrf.mxu0
  %v219 = vadd.f32 %v115, %v218
  %v220 = vpop.f32.mrf.mxu0
  %221 = vdwg.mxu0
  %v226 = vcombine.high %v204, %v204
  %v227 = vcombine.high %v209, %v209
  %v228 = vcombine.high %v214, %v214
  %v229 = vcombine.high %v219, %v219
  %vm234 = vcmask 261120
  %v236 = vsel %vm234, 0.0, 0
  %238 = vmatprep.subr.mxu0 0.0
  %239 = vmatpush1.msra.mxu0 0.0
  %240 = vmatprep.subr.mxu0 0.0
  %241 = vmatpush1.msra.mxu0 0.0
  %242 = vmatprep.subr.mxu0 0.0
  %243 = vmatpush1.msra.mxu0 0.0
  %244 = vmatprep.subr.mxu0 0.0
  %245 = vmatpush1.msra.mxu0 0.0
  %246 = vmatprep.subr.mxu0 0.0
  %247 = vmatpush1.msra.mxu0 0.0
  %248 = vmatprep.subr.mxu0 0.0
  %249 = vmatpush1.msra.mxu0 0.0
  %250 = vmatprep.subr.mxu0 0.0
  %251 = vmatpush1.msra.mxu0 0.0
  %252 = vmatprep.subr.mxu0 0.0
  %253 = vmatpush1.msra.mxu0 0.0
  %254 = vmatprep.subr.mxu0 0.0
  %255 = vmatpush1.msra.mxu0 0.0
  %256 = vmatprep.subr.mxu0 0.0
  %257 = vmatpush1.msra.mxu0 0.0
  %258 = vmatprep.subr.mxu0 0.0
  %259 = vmatpush1.msra.mxu0 0.0
  %260 = vmatprep.subr.mxu0 0.0
  %261 = vmatpush1.msra.mxu0 0.0
  %262 = vmatprep.subr.mxu0 0.0
  %263 = vmatpush1.msra.mxu0 %v24
  %264 = vmatprep.subr.mxu0 0.0
  %265 = vmatpush1.msra.mxu0 %v23
  %266 = vmatprep.subr.mxu0 0.0
  %267 = vmatpush1.msra.mxu0 %v22
  %268 = vmatprep.subr.mxu0 0.0
  %269 = vmatpush1.msra.mxu0 %v21
  %270 = vmatprep.subr.mxu0 0.0
  %271 = vmatpush2.msra.mxu0 0.0
  %272 = vmatprep.subr.mxu0 0.0
  %273 = vmatpush2.msra.mxu0 0.0
  %274 = vmatprep.subr.mxu0 0.0
  %275 = vmatpush2.msra.mxu0 0.0
  %276 = vmatprep.subr.mxu0 0.0
  %277 = vmatpush2.msra.mxu0 0.0
  %278 = vmatprep.subr.mxu0 0.0
  %279 = vmatpush2.msra.mxu0 0.0
  %280 = vmatprep.subr.mxu0 0.0
  %281 = vmatpush2.msra.mxu0 0.0
  %282 = vmatprep.subr.mxu0 0.0
  %283 = vmatpush2.msra.mxu0 0.0
  %284 = vmatprep.subr.mxu0 0.0
  %285 = vmatpush2.msra.mxu0 0.0
  %286 = vmatprep.subr.mxu0 0.0
  %287 = vmatpush2.msra.mxu0 0.0
  %288 = vmatprep.subr.mxu0 0.0
  %289 = vmatpush2.msra.mxu0 0.0
  %290 = vmatprep.subr.mxu0 0.0
  %291 = vmatpush2.msra.mxu0 0.0
  %292 = vmatprep.subr.mxu0 0.0
  %293 = vmatpush2.msra.mxu0 0.0
  %294 = vmatprep.subr.mxu0 0.0
  %295 = vmatpush2.msra.mxu0 0.0
  %296 = vmatprep.subr.mxu0 0.0
  %297 = vmatpush2.msra.mxu0 0.0
  %298 = vmatprep.subr.mxu0 0.0
  %299 = vmatpush2.msra.mxu0 0.0
  %300 = vmatprep.subr.mxu0 0.0
  %301 = vmatpush2.msra.mxu0 0.0
  %302 = vmatprep.mubr.f32.mxu0 0.0
  %303 = vmatmul.mubr.f32.gmra.mxu0 %v236
  %v304 = vpop.f32.mrf.mxu0
  %v305 = vadd.f32 0.0, %v304
  %v306 = vpop.f32.mrf.mxu0
  %307 = vdwg.mxu0
  %v308 = vadd.f32 %v204, %v305
  %v309 = vxor.u32 %v308, 2147483648
  %v310 = vmul.f32 %v309, 1.442695
  %v311 = vpow.pop %v310
  %v312 = vadd.f32 %v311, 1.0
  %v313 = vrcp.pop %v312
  %v314 = vmul.f32 1.0, %v313
  %v315 = vtanh.pop %v308
  %v316 = vmul.f32 %v314, 0.0
  %318 = vrot.lane.b32.xlu0 %v315, 64
  %v319 = vpop.permute.xlu0 %318
  %v321 = vmul.f32 %v314, %v319
  %323 = vrot.lane.b32.xlu0 %v321, 32
  %v324 = vpop.permute.xlu0 %323
  %v326 = vadd.f32 %v316, %v324
  %v327 = vtanh.pop %v326
  %329 = vrot.lane.b32.xlu0 %v327, 64
  %v330 = vpop.permute.xlu0 %329
  %v332 = vmul.f32 %v314, %v330
  %334 = vrot.lane.b32.xlu0 %v332, 32
  %v335 = vpop.permute.xlu0 %334
  %v336 = vsel %vm234, %v335, 0
  %338 = vmatprep.subr.mxu0 0.0
  %339 = vmatpush1.msra.mxu0 0.0
  %340 = vmatprep.subr.mxu0 0.0
  %341 = vmatpush1.msra.mxu0 0.0
  %342 = vmatprep.subr.mxu0 0.0
  %343 = vmatpush1.msra.mxu0 0.0
  %344 = vmatprep.subr.mxu0 0.0
  %345 = vmatpush1.msra.mxu0 0.0
  %346 = vmatprep.subr.mxu0 0.0
  %347 = vmatpush1.msra.mxu0 0.0
  %348 = vmatprep.subr.mxu0 0.0
  %349 = vmatpush1.msra.mxu0 0.0
  %350 = vmatprep.subr.mxu0 0.0
  %351 = vmatpush1.msra.mxu0 0.0
  %352 = vmatprep.subr.mxu0 0.0
  %353 = vmatpush1.msra.mxu0 0.0
  %354 = vmatprep.subr.mxu0 0.0
  %355 = vmatpush1.msra.mxu0 0.0
  %356 = vmatprep.subr.mxu0 0.0
  %357 = vmatpush1.msra.mxu0 0.0
  %358 = vmatprep.subr.mxu0 0.0
  %359 = vmatpush1.msra.mxu0 0.0
  %360 = vmatprep.subr.mxu0 0.0
  %361 = vmatpush1.msra.mxu0 0.0
  %362 = vmatprep.subr.mxu0 0.0
  %363 = vmatpush1.msra.mxu0 %v24
  %364 = vmatprep.subr.mxu0 0.0
  %365 = vmatpush1.msra.mxu0 %v23
  %366 = vmatprep.subr.mxu0 0.0
  %367 = vmatpush1.msra.mxu0 %v22
  %368 = vmatprep.subr.mxu0 0.0
  %369 = vmatpush1.msra.mxu0 %v21
  %370 = vmatprep.subr.mxu0 0.0
  %371 = vmatpush2.msra.mxu0 0.0
  %372 = vmatprep.subr.mxu0 0.0
  %373 = vmatpush2.msra.mxu0 0.0
  %374 = vmatprep.subr.mxu0 0.0
  %375 = vmatpush2.msra.mxu0 0.0
  %376 = vmatprep.subr.mxu0 0.0
  %377 = vmatpush2.msra.mxu0 0.0
  %378 = vmatprep.subr.mxu0 0.0
  %379 = vmatpush2.msra.mxu0 0.0
  %380 = vmatprep.subr.mxu0 0.0
  %381 = vmatpush2.msra.mxu0 0.0
  %382 = vmatprep.subr.mxu0 0.0
  %383 = vmatpush2.msra.mxu0 0.0
  %384 = vmatprep.subr.mxu0 0.0
  %385 = vmatpush2.msra.mxu0 0.0
  %386 = vmatprep.subr.mxu0 0.0
  %387 = vmatpush2.msra.mxu0 0.0
  %388 = vmatprep.subr.mxu0 0.0
  %389 = vmatpush2.msra.mxu0 0.0
  %390 = vmatprep.subr.mxu0 0.0
  %391 = vmatpush2.msra.mxu0 0.0
  %392 = vmatprep.subr.mxu0 0.0
  %393 = vmatpush2.msra.mxu0 0.0
  %394 = vmatprep.subr.mxu0 0.0
  %395 = vmatpush2.msra.mxu0 0.0
  %396 = vmatprep.subr.mxu0 0.0
  %397 = vmatpush2.msra.mxu0 0.0
  %398 = vmatprep.subr.mxu0 0.0
  %399 = vmatpush2.msra.mxu0 0.0
  %400 = vmatprep.subr.mxu0 0.0
  %401 = vmatpush2.msra.mxu0 0.0
  %402 = vmatprep.mubr.f32.mxu0 0.0
  %403 = vmatmul.mubr.f32.gmra.mxu0 %v336
  %v404 = vpop.f32.mrf.mxu0
  %v405 = vadd.f32 0.0, %v404
  %v406 = vpop.f32.mrf.mxu0
  %407 = vdwg.mxu0
  %v408 = vadd.f32 %v226, %v405
  %v409 = vxor.u32 %v408, 2147483648
  %v410 = vmul.f32 %v409, 1.442695
  %v411 = vpow.pop %v410
  %v412 = vadd.f32 %v411, 1.0
  %v413 = vrcp.pop %v412
  %v414 = vmul.f32 1.0, %v413
  %v415 = vtanh.pop %v408
  %v416 = vmul.f32 %v414, %v326
  %418 = vrot.lane.b32.xlu0 %v415, 64
  %v419 = vpop.permute.xlu0 %418
  %v421 = vmul.f32 %v414, %v419
  %423 = vrot.lane.b32.xlu0 %v421, 32
  %v424 = vpop.permute.xlu0 %423
  %v426 = vadd.f32 %v416, %v424
  %v427 = vtanh.pop %v426
  %429 = vrot.lane.b32.xlu0 %v427, 64
  %v430 = vpop.permute.xlu0 %429
  %v432 = vmul.f32 %v414, %v430
  %434 = vrot.lane.b32.xlu0 %v432, 32
  %v435 = vpop.permute.xlu0 %434
  %v436 = vsel %vm234, %v435, 0
  %438 = vmatprep.subr.mxu0 0.0
  %439 = vmatpush1.msra.mxu0 0.0
  %440 = vmatprep.subr.mxu0 0.0
  %441 = vmatpush1.msra.mxu0 0.0
  %442 = vmatprep.subr.mxu0 0.0
  %443 = vmatpush1.msra.mxu0 0.0
  %444 = vmatprep.subr.mxu0 0.0
  %445 = vmatpush1.msra.mxu0 0.0
  %446 = vmatprep.subr.mxu0 0.0
  %447 = vmatpush1.msra.mxu0 0.0
  %448 = vmatprep.subr.mxu0 0.0
  %449 = vmatpush1.msra.mxu0 0.0
  %450 = vmatprep.subr.mxu0 0.0
  %451 = vmatpush1.msra.mxu0 0.0
  %452 = vmatprep.subr.mxu0 0.0
  %453 = vmatpush1.msra.mxu0 0.0
  %454 = vmatprep.subr.mxu0 0.0
  %455 = vmatpush1.msra.mxu0 0.0
  %456 = vmatprep.subr.mxu0 0.0
  %457 = vmatpush1.msra.mxu0 0.0
  %458 = vmatprep.subr.mxu0 0.0
  %459 = vmatpush1.msra.mxu0 0.0
  %460 = vmatprep.subr.mxu0 0.0
  %461 = vmatpush1.msra.mxu0 0.0
  %462 = vmatprep.subr.mxu0 0.0
  %463 = vmatpush1.msra.mxu0 %v24
  %464 = vmatprep.subr.mxu0 0.0
  %465 = vmatpush1.msra.mxu0 %v23
  %466 = vmatprep.subr.mxu0 0.0
  %467 = vmatpush1.msra.mxu0 %v22
  %468 = vmatprep.subr.mxu0 0.0
  %469 = vmatpush1.msra.mxu0 %v21
  %470 = vmatprep.subr.mxu0 0.0
  %471 = vmatpush2.msra.mxu0 0.0
  %472 = vmatprep.subr.mxu0 0.0
  %473 = vmatpush2.msra.mxu0 0.0
  %474 = vmatprep.subr.mxu0 0.0
  %475 = vmatpush2.msra.mxu0 0.0
  %476 = vmatprep.subr.mxu0 0.0
  %477 = vmatpush2.msra.mxu0 0.0
  %478 = vmatprep.subr.mxu0 0.0
  %479 = vmatpush2.msra.mxu0 0.0
  %480 = vmatprep.subr.mxu0 0.0
  %481 = vmatpush2.msra.mxu0 0.0
  %482 = vmatprep.subr.mxu0 0.0
  %483 = vmatpush2.msra.mxu0 0.0
  %484 = vmatprep.subr.mxu0 0.0
  %485 = vmatpush2.msra.mxu0 0.0
  %486 = vmatprep.subr.mxu0 0.0
  %487 = vmatpush2.msra.mxu0 0.0
  %488 = vmatprep.subr.mxu0 0.0
  %489 = vmatpush2.msra.mxu0 0.0
  %490 = vmatprep.subr.mxu0 0.0
  %491 = vmatpush2.msra.mxu0 0.0
  %492 = vmatprep.subr.mxu0 0.0
  %493 = vmatpush2.msra.mxu0 0.0
  %494 = vmatprep.subr.mxu0 0.0
  %495 = vmatpush2.msra.mxu0 0.0
  %496 = vmatprep.subr.mxu0 0.0
  %497 = vmatpush2.msra.mxu0 0.0
  %498 = vmatprep.subr.mxu0 0.0
  %499 = vmatpush2.msra.mxu0 0.0
  %500 = vmatprep.subr.mxu0 0.0
  %501 = vmatpush2.msra.mxu0 0.0
  %502 = vmatprep.mubr.f32.mxu0 0.0
  %503 = vmatmul.mubr.f32.gmra.mxu0 %v436
  %v504 = vpop.f32.mrf.mxu0
  %v505 = vadd.f32 0.0, %v504
  %v506 = vpop.f32.mrf.mxu0
  %507 = vdwg.mxu0
  %v508 = vadd.f32 %v209, %v505
  %v509 = vxor.u32 %v508, 2147483648
  %v510 = vmul.f32 %v509, 1.442695
  %v511 = vpow.pop %v510
  %v512 = vadd.f32 %v511, 1.0
  %v513 = vrcp.pop %v512
  %v514 = vmul.f32 1.0, %v513
  %v515 = vtanh.pop %v508
  %v516 = vmul.f32 %v514, %v426
  %518 = vrot.lane.b32.xlu0 %v515, 64
  %v519 = vpop.permute.xlu0 %518
  %v521 = vmul.f32 %v514, %v519
  %523 = vrot.lane.b32.xlu0 %v521, 32
  %v524 = vpop.permute.xlu0 %523
  %v526 = vadd.f32 %v516, %v524
  %v527 = vtanh.pop %v526
  %529 = vrot.lane.b32.xlu0 %v527, 64
  %v530 = vpop.permute.xlu0 %529
  %v532 = vmul.f32 %v514, %v530
  %534 = vrot.lane.b32.xlu0 %v532, 32
  %v535 = vpop.permute.xlu0 %534
  %v536 = vsel %vm234, %v535, 0
  %538 = vmatprep.subr.mxu0 0.0
  %539 = vmatpush1.msra.mxu0 0.0
  %540 = vmatprep.subr.mxu0 0.0
  %541 = vmatpush1.msra.mxu0 0.0
  %542 = vmatprep.subr.mxu0 0.0
  %543 = vmatpush1.msra.mxu0 0.0
  %544 = vmatprep.subr.mxu0 0.0
  %545 = vmatpush1.msra.mxu0 0.0
  %546 = vmatprep.subr.mxu0 0.0
  %547 = vmatpush1.msra.mxu0 0.0
  %548 = vmatprep.subr.mxu0 0.0
  %549 = vmatpush1.msra.mxu0 0.0
  %550 = vmatprep.subr.mxu0 0.0
  %551 = vmatpush1.msra.mxu0 0.0
  %552 = vmatprep.subr.mxu0 0.0
  %553 = vmatpush1.msra.mxu0 0.0
  %554 = vmatprep.subr.mxu0 0.0
  %555 = vmatpush1.msra.mxu0 0.0
  %556 = vmatprep.subr.mxu0 0.0
  %557 = vmatpush1.msra.mxu0 0.0
  %558 = vmatprep.subr.mxu0 0.0
  %559 = vmatpush1.msra.mxu0 0.0
  %560 = vmatprep.subr.mxu0 0.0
  %561 = vmatpush1.msra.mxu0 0.0
  %562 = vmatprep.subr.mxu0 0.0
  %563 = vmatpush1.msra.mxu0 %v24
  %564 = vmatprep.subr.mxu0 0.0
  %565 = vmatpush1.msra.mxu0 %v23
  %566 = vmatprep.subr.mxu0 0.0
  %567 = vmatpush1.msra.mxu0 %v22
  %568 = vmatprep.subr.mxu0 0.0
  %569 = vmatpush1.msra.mxu0 %v21
  %570 = vmatprep.subr.mxu0 0.0
  %571 = vmatpush2.msra.mxu0 0.0
  %572 = vmatprep.subr.mxu0 0.0
  %573 = vmatpush2.msra.mxu0 0.0
  %574 = vmatprep.subr.mxu0 0.0
  %575 = vmatpush2.msra.mxu0 0.0
  %576 = vmatprep.subr.mxu0 0.0
  %577 = vmatpush2.msra.mxu0 0.0
  %578 = vmatprep.subr.mxu0 0.0
  %579 = vmatpush2.msra.mxu0 0.0
  %580 = vmatprep.subr.mxu0 0.0
  %581 = vmatpush2.msra.mxu0 0.0
  %582 = vmatprep.subr.mxu0 0.0
  %583 = vmatpush2.msra.mxu0 0.0
  %584 = vmatprep.subr.mxu0 0.0
  %585 = vmatpush2.msra.mxu0 0.0
  %586 = vmatprep.subr.mxu0 0.0
  %587 = vmatpush2.msra.mxu0 0.0
  %588 = vmatprep.subr.mxu0 0.0
  %589 = vmatpush2.msra.mxu0 0.0
  %590 = vmatprep.subr.mxu0 0.0
  %591 = vmatpush2.msra.mxu0 0.0
  %592 = vmatprep.subr.mxu0 0.0
  %593 = vmatpush2.msra.mxu0 0.0
  %594 = vmatprep.subr.mxu0 0.0
  %595 = vmatpush2.msra.mxu0 0.0
  %596 = vmatprep.subr.mxu0 0.0
  %597 = vmatpush2.msra.mxu0 0.0
  %598 = vmatprep.subr.mxu0 0.0
  %599 = vmatpush2.msra.mxu0 0.0
  %600 = vmatprep.subr.mxu0 0.0
  %601 = vmatpush2.msra.mxu0 0.0
  %602 = vmatprep.mubr.f32.mxu0 0.0
  %603 = vmatmul.mubr.f32.gmra.mxu0 %v536
  %v604 = vpop.f32.mrf.mxu0
  %v605 = vadd.f32 0.0, %v604
  %v606 = vpop.f32.mrf.mxu0
  %607 = vdwg.mxu0
  %v608 = vadd.f32 %v227, %v605
  %v609 = vxor.u32 %v608, 2147483648
  %v610 = vmul.f32 %v609, 1.442695
  %v611 = vpow.pop %v610
  %v612 = vadd.f32 %v611, 1.0
  %v613 = vrcp.pop %v612
  %v614 = vmul.f32 1.0, %v613
  %v615 = vtanh.pop %v608
  %v616 = vmul.f32 %v614, %v526
  %618 = vrot.lane.b32.xlu0 %v615, 64
  %v619 = vpop.permute.xlu0 %618
  %v621 = vmul.f32 %v614, %v619
  %623 = vrot.lane.b32.xlu0 %v621, 32
  %v624 = vpop.permute.xlu0 %623
  %v626 = vadd.f32 %v616, %v624
  %v627 = vtanh.pop %v626
  %629 = vrot.lane.b32.xlu0 %v627, 64
  %v630 = vpop.permute.xlu0 %629
  %v632 = vmul.f32 %v614, %v630
  %634 = vrot.lane.b32.xlu0 %v632, 32
  %v635 = vpop.permute.xlu0 %634
  %v636 = vsel %vm234, %v635, 0
  %638 = vmatprep.subr.mxu0 0.0
  %639 = vmatpush1.msra.mxu0 0.0
  %640 = vmatprep.subr.mxu0 0.0
  %641 = vmatpush1.msra.mxu0 0.0
  %642 = vmatprep.subr.mxu0 0.0
  %643 = vmatpush1.msra.mxu0 0.0
  %644 = vmatprep.subr.mxu0 0.0
  %645 = vmatpush1.msra.mxu0 0.0
  %646 = vmatprep.subr.mxu0 0.0
  %647 = vmatpush1.msra.mxu0 0.0
  %648 = vmatprep.subr.mxu0 0.0
  %649 = vmatpush1.msra.mxu0 0.0
  %650 = vmatprep.subr.mxu0 0.0
  %651 = vmatpush1.msra.mxu0 0.0
  %652 = vmatprep.subr.mxu0 0.0
  %653 = vmatpush1.msra.mxu0 0.0
  %654 = vmatprep.subr.mxu0 0.0
  %655 = vmatpush1.msra.mxu0 0.0
  %656 = vmatprep.subr.mxu0 0.0
  %657 = vmatpush1.msra.mxu0 0.0
  %658 = vmatprep.subr.mxu0 0.0
  %659 = vmatpush1.msra.mxu0 0.0
  %660 = vmatprep.subr.mxu0 0.0
  %661 = vmatpush1.msra.mxu0 0.0
  %662 = vmatprep.subr.mxu0 0.0
  %663 = vmatpush1.msra.mxu0 %v24
  %664 = vmatprep.subr.mxu0 0.0
  %665 = vmatpush1.msra.mxu0 %v23
  %666 = vmatprep.subr.mxu0 0.0
  %667 = vmatpush1.msra.mxu0 %v22
  %668 = vmatprep.subr.mxu0 0.0
  %669 = vmatpush1.msra.mxu0 %v21
  %670 = vmatprep.subr.mxu0 0.0
  %671 = vmatpush2.msra.mxu0 0.0
  %672 = vmatprep.subr.mxu0 0.0
  %673 = vmatpush2.msra.mxu0 0.0
  %674 = vmatprep.subr.mxu0 0.0
  %675 = vmatpush2.msra.mxu0 0.0
  %676 = vmatprep.subr.mxu0 0.0
  %677 = vmatpush2.msra.mxu0 0.0
  %678 = vmatprep.subr.mxu0 0.0
  %679 = vmatpush2.msra.mxu0 0.0
  %680 = vmatprep.subr.mxu0 0.0
  %681 = vmatpush2.msra.mxu0 0.0
  %682 = vmatprep.subr.mxu0 0.0
  %683 = vmatpush2.msra.mxu0 0.0
  %684 = vmatprep.subr.mxu0 0.0
  %685 = vmatpush2.msra.mxu0 0.0
  %686 = vmatprep.subr.mxu0 0.0
  %687 = vmatpush2.msra.mxu0 0.0
  %688 = vmatprep.subr.mxu0 0.0
  %689 = vmatpush2.msra.mxu0 0.0
  %690 = vmatprep.subr.mxu0 0.0
  %691 = vmatpush2.msra.mxu0 0.0
  %692 = vmatprep.subr.mxu0 0.0
  %693 = vmatpush2.msra.mxu0 0.0
  %694 = vmatprep.subr.mxu0 0.0
  %695 = vmatpush2.msra.mxu0 0.0
  %696 = vmatprep.subr.mxu0 0.0
  %697 = vmatpush2.msra.mxu0 0.0
  %698 = vmatprep.subr.mxu0 0.0
  %699 = vmatpush2.msra.mxu0 0.0
  %700 = vmatprep.subr.mxu0 0.0
  %701 = vmatpush2.msra.mxu0 0.0
  %702 = vmatprep.mubr.f32.mxu0 0.0
  %703 = vmatmul.mubr.f32.gmra.mxu0 %v636
  %v704 = vpop.f32.mrf.mxu0
  %v705 = vadd.f32 0.0, %v704
  %v706 = vpop.f32.mrf.mxu0
  %707 = vdwg.mxu0
  %v708 = vadd.f32 %v214, %v705
  %v709 = vxor.u32 %v708, 2147483648
  %v710 = vmul.f32 %v709, 1.442695
  %v711 = vpow.pop %v710
  %v712 = vadd.f32 %v711, 1.0
  %v713 = vrcp.pop %v712
  %v714 = vmul.f32 1.0, %v713
  %v715 = vtanh.pop %v708
  %v716 = vmul.f32 %v714, %v626
  %718 = vrot.lane.b32.xlu0 %v715, 64
  %v719 = vpop.permute.xlu0 %718
  %v721 = vmul.f32 %v714, %v719
  %723 = vrot.lane.b32.xlu0 %v721, 32
  %v724 = vpop.permute.xlu0 %723
  %v726 = vadd.f32 %v716, %v724
  %v727 = vtanh.pop %v726
  %729 = vrot.lane.b32.xlu0 %v727, 64
  %v730 = vpop.permute.xlu0 %729
  %v732 = vmul.f32 %v714, %v730
  %734 = vrot.lane.b32.xlu0 %v732, 32
  %v735 = vpop.permute.xlu0 %734
  %v736 = vsel %vm234, %v735, 0
  %738 = vmatprep.subr.mxu0 0.0
  %739 = vmatpush1.msra.mxu0 0.0
  %740 = vmatprep.subr.mxu0 0.0
  %741 = vmatpush1.msra.mxu0 0.0
  %742 = vmatprep.subr.mxu0 0.0
  %743 = vmatpush1.msra.mxu0 0.0
  %744 = vmatprep.subr.mxu0 0.0
  %745 = vmatpush1.msra.mxu0 0.0
  %746 = vmatprep.subr.mxu0 0.0
  %747 = vmatpush1.msra.mxu0 0.0
  %748 = vmatprep.subr.mxu0 0.0
  %749 = vmatpush1.msra.mxu0 0.0
  %750 = vmatprep.subr.mxu0 0.0
  %751 = vmatpush1.msra.mxu0 0.0
  %752 = vmatprep.subr.mxu0 0.0
  %753 = vmatpush1.msra.mxu0 0.0
  %754 = vmatprep.subr.mxu0 0.0
  %755 = vmatpush1.msra.mxu0 0.0
  %756 = vmatprep.subr.mxu0 0.0
  %757 = vmatpush1.msra.mxu0 0.0
  %758 = vmatprep.subr.mxu0 0.0
  %759 = vmatpush1.msra.mxu0 0.0
  %760 = vmatprep.subr.mxu0 0.0
  %761 = vmatpush1.msra.mxu0 0.0
  %762 = vmatprep.subr.mxu0 0.0
  %763 = vmatpush1.msra.mxu0 %v24
  %764 = vmatprep.subr.mxu0 0.0
  %765 = vmatpush1.msra.mxu0 %v23
  %766 = vmatprep.subr.mxu0 0.0
  %767 = vmatpush1.msra.mxu0 %v22
  %768 = vmatprep.subr.mxu0 0.0
  %769 = vmatpush1.msra.mxu0 %v21
  %770 = vmatprep.subr.mxu0 0.0
  %771 = vmatpush2.msra.mxu0 0.0
  %772 = vmatprep.subr.mxu0 0.0
  %773 = vmatpush2.msra.mxu0 0.0
  %774 = vmatprep.subr.mxu0 0.0
  %775 = vmatpush2.msra.mxu0 0.0
  %776 = vmatprep.subr.mxu0 0.0
  %777 = vmatpush2.msra.mxu0 0.0
  %778 = vmatprep.subr.mxu0 0.0
  %779 = vmatpush2.msra.mxu0 0.0
  %780 = vmatprep.subr.mxu0 0.0
  %781 = vmatpush2.msra.mxu0 0.0
  %782 = vmatprep.subr.mxu0 0.0
  %783 = vmatpush2.msra.mxu0 0.0
  %784 = vmatprep.subr.mxu0 0.0
  %785 = vmatpush2.msra.mxu0 0.0
  %786 = vmatprep.subr.mxu0 0.0
  %787 = vmatpush2.msra.mxu0 0.0
  %788 = vmatprep.subr.mxu0 0.0
  %789 = vmatpush2.msra.mxu0 0.0
  %790 = vmatprep.subr.mxu0 0.0
  %791 = vmatpush2.msra.mxu0 0.0
  %792 = vmatprep.subr.mxu0 0.0
  %793 = vmatpush2.msra.mxu0 0.0
  %794 = vmatprep.subr.mxu0 0.0
  %795 = vmatpush2.msra.mxu0 0.0
  %796 = vmatprep.subr.mxu0 0.0
  %797 = vmatpush2.msra.mxu0 0.0
  %798 = vmatprep.subr.mxu0 0.0
  %799 = vmatpush2.msra.mxu0 0.0
  %800 = vmatprep.subr.mxu0 0.0
  %801 = vmatpush2.msra.mxu0 0.0
  %802 = vmatprep.mubr.f32.mxu0 0.0
  %803 = vmatmul.mubr.f32.gmra.mxu0 %v736
  %v804 = vpop.f32.mrf.mxu0
  %v805 = vadd.f32 0.0, %v804
  %v806 = vpop.f32.mrf.mxu0
  %807 = vdwg.mxu0
  %v808 = vadd.f32 %v228, %v805
  %v809 = vxor.u32 %v808, 2147483648
  %v810 = vmul.f32 %v809, 1.442695
  %v811 = vpow.pop %v810
  %v812 = vadd.f32 %v811, 1.0
  %v813 = vrcp.pop %v812
  %v814 = vmul.f32 1.0, %v813
  %v815 = vtanh.pop %v808
  %v816 = vmul.f32 %v814, %v726
  %818 = vrot.lane.b32.xlu0 %v815, 64
  %v819 = vpop.permute.xlu0 %818
  %v821 = vmul.f32 %v814, %v819
  %823 = vrot.lane.b32.xlu0 %v821, 32
  %v824 = vpop.permute.xlu0 %823
  %v826 = vadd.f32 %v816, %v824
  %v827 = vtanh.pop %v826
  %829 = vrot.lane.b32.xlu0 %v827, 64
  %v830 = vpop.permute.xlu0 %829
  %v832 = vmul.f32 %v814, %v830
  %834 = vrot.lane.b32.xlu0 %v832, 32
  %v835 = vpop.permute.xlu0 %834
  %v836 = vsel %vm234, %v835, 0
  %838 = vmatprep.subr.mxu0 0.0
  %839 = vmatpush1.msra.mxu0 0.0
  %840 = vmatprep.subr.mxu0 0.0
  %841 = vmatpush1.msra.mxu0 0.0
  %842 = vmatprep.subr.mxu0 0.0
  %843 = vmatpush1.msra.mxu0 0.0
  %844 = vmatprep.subr.mxu0 0.0
  %845 = vmatpush1.msra.mxu0 0.0
  %846 = vmatprep.subr.mxu0 0.0
  %847 = vmatpush1.msra.mxu0 0.0
  %848 = vmatprep.subr.mxu0 0.0
  %849 = vmatpush1.msra.mxu0 0.0
  %850 = vmatprep.subr.mxu0 0.0
  %851 = vmatpush1.msra.mxu0 0.0
  %852 = vmatprep.subr.mxu0 0.0
  %853 = vmatpush1.msra.mxu0 0.0
  %854 = vmatprep.subr.mxu0 0.0
  %855 = vmatpush1.msra.mxu0 0.0
  %856 = vmatprep.subr.mxu0 0.0
  %857 = vmatpush1.msra.mxu0 0.0
  %858 = vmatprep.subr.mxu0 0.0
  %859 = vmatpush1.msra.mxu0 0.0
  %860 = vmatprep.subr.mxu0 0.0
  %861 = vmatpush1.msra.mxu0 0.0
  %862 = vmatprep.subr.mxu0 0.0
  %863 = vmatpush1.msra.mxu0 %v24
  %864 = vmatprep.subr.mxu0 0.0
  %865 = vmatpush1.msra.mxu0 %v23
  %866 = vmatprep.subr.mxu0 0.0
  %867 = vmatpush1.msra.mxu0 %v22
  %868 = vmatprep.subr.mxu0 0.0
  %869 = vmatpush1.msra.mxu0 %v21
  %870 = vmatprep.subr.mxu0 0.0
  %871 = vmatpush2.msra.mxu0 0.0
  %872 = vmatprep.subr.mxu0 0.0
  %873 = vmatpush2.msra.mxu0 0.0
  %874 = vmatprep.subr.mxu0 0.0
  %875 = vmatpush2.msra.mxu0 0.0
  %876 = vmatprep.subr.mxu0 0.0
  %877 = vmatpush2.msra.mxu0 0.0
  %878 = vmatprep.subr.mxu0 0.0
  %879 = vmatpush2.msra.mxu0 0.0
  %880 = vmatprep.subr.mxu0 0.0
  %881 = vmatpush2.msra.mxu0 0.0
  %882 = vmatprep.subr.mxu0 0.0
  %883 = vmatpush2.msra.mxu0 0.0
  %884 = vmatprep.subr.mxu0 0.0
  %885 = vmatpush2.msra.mxu0 0.0
  %886 = vmatprep.subr.mxu0 0.0
  %887 = vmatpush2.msra.mxu0 0.0
  %888 = vmatprep.subr.mxu0 0.0
  %889 = vmatpush2.msra.mxu0 0.0
  %890 = vmatprep.subr.mxu0 0.0
  %891 = vmatpush2.msra.mxu0 0.0
  %892 = vmatprep.subr.mxu0 0.0
  %893 = vmatpush2.msra.mxu0 0.0
  %894 = vmatprep.subr.mxu0 0.0
  %895 = vmatpush2.msra.mxu0 0.0
  %896 = vmatprep.subr.mxu0 0.0
  %897 = vmatpush2.msra.mxu0 0.0
  %898 = vmatprep.subr.mxu0 0.0
  %899 = vmatpush2.msra.mxu0 0.0
  %900 = vmatprep.subr.mxu0 0.0
  %901 = vmatpush2.msra.mxu0 0.0
  %902 = vmatprep.mubr.f32.mxu0 0.0
  %903 = vmatmul.mubr.f32.gmra.mxu0 %v836
  %v904 = vpop.f32.mrf.mxu0
  %v905 = vadd.f32 0.0, %v904
  %v906 = vpop.f32.mrf.mxu0
  %907 = vdwg.mxu0
  %v908 = vadd.f32 %v219, %v905
  %v909 = vxor.u32 %v908, 2147483648
  %v910 = vmul.f32 %v909, 1.442695
  %v911 = vpow.pop %v910
  %v912 = vadd.f32 %v911, 1.0
  %v913 = vrcp.pop %v912
  %v914 = vmul.f32 1.0, %v913
  %v915 = vtanh.pop %v908
  %v916 = vmul.f32 %v914, %v826
  %918 = vrot.lane.b32.xlu0 %v915, 64
  %v919 = vpop.permute.xlu0 %918
  %v921 = vmul.f32 %v914, %v919
  %923 = vrot.lane.b32.xlu0 %v921, 32
  %v924 = vpop.permute.xlu0 %923
  %v926 = vadd.f32 %v916, %v924
  %v927 = vtanh.pop %v926
  %929 = vrot.lane.b32.xlu0 %v927, 64
  %v930 = vpop.permute.xlu0 %929
  %v932 = vmul.f32 %v914, %v930
  %934 = vrot.lane.b32.xlu0 %v932, 32
  %v935 = vpop.permute.xlu0 %934
  %v936 = vsel %vm234, %v935, 0
  %938 = vmatprep.subr.mxu0 0.0
  %939 = vmatpush1.msra.mxu0 0.0
  %940 = vmatprep.subr.mxu0 0.0
  %941 = vmatpush1.msra.mxu0 0.0
  %942 = vmatprep.subr.mxu0 0.0
  %943 = vmatpush1.msra.mxu0 0.0
  %944 = vmatprep.subr.mxu0 0.0
  %945 = vmatpush1.msra.mxu0 0.0
  %946 = vmatprep.subr.mxu0 0.0
  %947 = vmatpush1.msra.mxu0 0.0
  %948 = vmatprep.subr.mxu0 0.0
  %949 = vmatpush1.msra.mxu0 0.0
  %950 = vmatprep.subr.mxu0 0.0
  %951 = vmatpush1.msra.mxu0 0.0
  %952 = vmatprep.subr.mxu0 0.0
  %953 = vmatpush1.msra.mxu0 0.0
  %954 = vmatprep.subr.mxu0 0.0
  %955 = vmatpush1.msra.mxu0 0.0
  %956 = vmatprep.subr.mxu0 0.0
  %957 = vmatpush1.msra.mxu0 0.0
  %958 = vmatprep.subr.mxu0 0.0
  %959 = vmatpush1.msra.mxu0 0.0
  %960 = vmatprep.subr.mxu0 0.0
  %961 = vmatpush1.msra.mxu0 0.0
  %962 = vmatprep.subr.mxu0 0.0
  %963 = vmatpush1.msra.mxu0 %v24
  %964 = vmatprep.subr.mxu0 0.0
  %965 = vmatpush1.msra.mxu0 %v23
  %966 = vmatprep.subr.mxu0 0.0
  %967 = vmatpush1.msra.mxu0 %v22
  %968 = vmatprep.subr.mxu0 0.0
  %969 = vmatpush1.msra.mxu0 %v21
  %970 = vmatprep.subr.mxu0 0.0
  %971 = vmatpush2.msra.mxu0 0.0
  %972 = vmatprep.subr.mxu0 0.0
  %973 = vmatpush2.msra.mxu0 0.0
  %974 = vmatprep.subr.mxu0 0.0
  %975 = vmatpush2.msra.mxu0 0.0
  %976 = vmatprep.subr.mxu0 0.0
  %977 = vmatpush2.msra.mxu0 0.0
  %978 = vmatprep.subr.mxu0 0.0
  %979 = vmatpush2.msra.mxu0 0.0
  %980 = vmatprep.subr.mxu0 0.0
  %981 = vmatpush2.msra.mxu0 0.0
  %982 = vmatprep.subr.mxu0 0.0
  %983 = vmatpush2.msra.mxu0 0.0
  %984 = vmatprep.subr.mxu0 0.0
  %985 = vmatpush2.msra.mxu0 0.0
  %986 = vmatprep.subr.mxu0 0.0
  %987 = vmatpush2.msra.mxu0 0.0
  %988 = vmatprep.subr.mxu0 0.0
  %989 = vmatpush2.msra.mxu0 0.0
  %990 = vmatprep.subr.mxu0 0.0
  %991 = vmatpush2.msra.mxu0 0.0
  %992 = vmatprep.subr.mxu0 0.0
  %993 = vmatpush2.msra.mxu0 0.0
  %994 = vmatprep.subr.mxu0 0.0
  %995 = vmatpush2.msra.mxu0 0.0
  %996 = vmatprep.subr.mxu0 0.0
  %997 = vmatpush2.msra.mxu0 0.0
  %998 = vmatprep.subr.mxu0 0.0
  %999 = vmatpush2.msra.mxu0 0.0
  %1000 = vmatprep.subr.mxu0 0.0
  %1001 = vmatpush2.msra.mxu0 0.0
  %1002 = vmatprep.mubr.f32.mxu0 0.0
  %1003 = vmatmul.mubr.f32.gmra.mxu0 %v936
  %v1004 = vpop.f32.mrf.mxu0
  %v1005 = vadd.f32 0.0, %v1004
  %v1006 = vpop.f32.mrf.mxu0
  %1007 = vdwg.mxu0
  %v1008 = vadd.f32 %v229, %v1005
  %v1009 = vxor.u32 %v1008, 2147483648
  %v1010 = vmul.f32 %v1009, 1.442695
  %v1011 = vpow.pop %v1010
  %v1012 = vadd.f32 %v1011, 1.0
  %v1013 = vrcp.pop %v1012
  %v1014 = vmul.f32 1.0, %v1013
  %v1015 = vtanh.pop %v1008
  %v1016 = vmul.f32 %v1014, %v926
  %1018 = vrot.lane.b32.xlu0 %v1015, 64
  %v1019 = vpop.permute.xlu0 %1018
  %v1021 = vmul.f32 %v1014, %v1019
  %1023 = vrot.lane.b32.xlu0 %v1021, 32
  %v1024 = vpop.permute.xlu0 %1023
  %v1026 = vadd.f32 %v1016, %v1024
  %v1027 = vtanh.pop %v1026
  %1029 = vrot.lane.b32.xlu0 %v1027, 64
  %v1030 = vpop.permute.xlu0 %1029
  %v1032 = vmul.f32 %v1014, %v1030
  %v1033 = vlaneseq
  %v1034 = vshrl.u32 %v1033, 7
  %v1035 = vsub.s32 0, %v1034
  %v1036 = vrot.slane %v30, %v1035
  %1038 = vrot.lane.b32.xlu0 %v1032, 32
  %v1039 = vpop.permute.xlu0 %1038
  %v1040 = vsel %vm234, %v1039, 0
  %1042 = vmatprep.subr.mxu0 0.0
  %1043 = vmatpush1.msra.mxu0 0.0
  %1044 = vmatprep.subr.mxu0 0.0
  %1045 = vmatpush1.msra.mxu0 0.0
  %1046 = vmatprep.subr.mxu0 0.0
  %1047 = vmatpush1.msra.mxu0 0.0
  %1048 = vmatprep.subr.mxu0 0.0
  %1049 = vmatpush1.msra.mxu0 0.0
  %1050 = vmatprep.subr.mxu0 0.0
  %1051 = vmatpush1.msra.mxu0 0.0
  %1052 = vmatprep.subr.mxu0 0.0
  %1053 = vmatpush1.msra.mxu0 0.0
  %1054 = vmatprep.subr.mxu0 0.0
  %1055 = vmatpush1.msra.mxu0 0.0
  %1056 = vmatprep.subr.mxu0 0.0
  %1057 = vmatpush1.msra.mxu0 0.0
  %1058 = vmatprep.subr.mxu0 0.0
  %1059 = vmatpush1.msra.mxu0 0.0
  %1060 = vmatprep.subr.mxu0 0.0
  %1061 = vmatpush1.msra.mxu0 0.0
  %1062 = vmatprep.subr.mxu0 0.0
  %1063 = vmatpush1.msra.mxu0 0.0
  %1064 = vmatprep.subr.mxu0 0.0
  %1065 = vmatpush1.msra.mxu0 0.0
  %1066 = vmatprep.subr.mxu0 0.0
  %1067 = vmatpush1.msra.mxu0 %v29
  %1068 = vmatprep.subr.mxu0 0.0
  %1069 = vmatpush1.msra.mxu0 %v28
  %1070 = vmatprep.subr.mxu0 0.0
  %1071 = vmatpush1.msra.mxu0 %v27
  %1072 = vmatprep.subr.mxu0 0.0
  %1073 = vmatpush1.msra.mxu0 %v26
  %1074 = vmatprep.subr.mxu0 0.0
  %1075 = vmatpush2.msra.mxu0 0.0
  %1076 = vmatprep.subr.mxu0 0.0
  %1077 = vmatpush2.msra.mxu0 0.0
  %1078 = vmatprep.subr.mxu0 0.0
  %1079 = vmatpush2.msra.mxu0 0.0
  %1080 = vmatprep.subr.mxu0 0.0
  %1081 = vmatpush2.msra.mxu0 0.0
  %1082 = vmatprep.subr.mxu0 0.0
  %1083 = vmatpush2.msra.mxu0 0.0
  %1084 = vmatprep.subr.mxu0 0.0
  %1085 = vmatpush2.msra.mxu0 0.0
  %1086 = vmatprep.subr.mxu0 0.0
  %1087 = vmatpush2.msra.mxu0 0.0
  %1088 = vmatprep.subr.mxu0 0.0
  %1089 = vmatpush2.msra.mxu0 0.0
  %1090 = vmatprep.subr.mxu0 0.0
  %1091 = vmatpush2.msra.mxu0 0.0
  %1092 = vmatprep.subr.mxu0 0.0
  %1093 = vmatpush2.msra.mxu0 0.0
  %1094 = vmatprep.subr.mxu0 0.0
  %1095 = vmatpush2.msra.mxu0 0.0
  %1096 = vmatprep.subr.mxu0 0.0
  %1097 = vmatpush2.msra.mxu0 0.0
  %1098 = vmatprep.subr.mxu0 0.0
  %1099 = vmatpush2.msra.mxu0 0.0
  %1100 = vmatprep.subr.mxu0 0.0
  %1101 = vmatpush2.msra.mxu0 0.0
  %1102 = vmatprep.subr.mxu0 0.0
  %1103 = vmatpush2.msra.mxu0 0.0
  %1104 = vmatprep.subr.mxu0 0.0
  %1105 = vmatpush2.msra.mxu0 0.0
  %1106 = vmatprep.mubr.f32.mxu0 0.0
  %1107 = vmatmul.mubr.f32.gmra.mxu0 %v1040
  %v1108 = vpop.f32.mrf.mxu0
  %v1109 = vadd.f32 %v1036, %v1108
  %v1110 = vpop.f32.mrf.mxu0
  %1111 = vdwg.mxu0
  %v1112 = vlaneseq
  %v1113 = vshrl.u32 %v1112, 7
  %v1114 = vsub.s32 0, %v1113
  %v1115 = vrot.slane %v33, %v1114
  %vm1116 = vcmask 130048
  %v1118 = vsel %vm1116, %v1109, 0
  %1120 = vmatprep.subr.mxu0 0.0
  %1121 = vmatpush1.msra.mxu0 0.0
  %1122 = vmatprep.subr.mxu0 0.0
  %1123 = vmatpush1.msra.mxu0 0.0
  %1124 = vmatprep.subr.mxu0 0.0
  %1125 = vmatpush1.msra.mxu0 0.0
  %1126 = vmatprep.subr.mxu0 0.0
  %1127 = vmatpush1.msra.mxu0 0.0
  %1128 = vmatprep.subr.mxu0 0.0
  %1129 = vmatpush1.msra.mxu0 0.0
  %1130 = vmatprep.subr.mxu0 0.0
  %1131 = vmatpush1.msra.mxu0 0.0
  %1132 = vmatprep.subr.mxu0 0.0
  %1133 = vmatpush1.msra.mxu0 0.0
  %1134 = vmatprep.subr.mxu0 0.0
  %1135 = vmatpush1.msra.mxu0 0.0
  %1136 = vmatprep.subr.mxu0 0.0
  %1137 = vmatpush1.msra.mxu0 0.0
  %1138 = vmatprep.subr.mxu0 0.0
  %1139 = vmatpush1.msra.mxu0 0.0
  %1140 = vmatprep.subr.mxu0 0.0
  %1141 = vmatpush1.msra.mxu0 0.0
  %1142 = vmatprep.subr.mxu0 0.0
  %1143 = vmatpush1.msra.mxu0 0.0
  %1144 = vmatprep.subr.mxu0 0.0
  %1145 = vmatpush1.msra.mxu0 0.0
  %1146 = vmatprep.subr.mxu0 0.0
  %1147 = vmatpush1.msra.mxu0 0.0
  %1148 = vmatprep.subr.mxu0 0.0
  %1149 = vmatpush1.msra.mxu0 %v32
  %1150 = vmatprep.subr.mxu0 0.0
  %1151 = vmatpush1.msra.mxu0 %v31
  %1152 = vmatprep.subr.mxu0 0.0
  %1153 = vmatpush2.msra.mxu0 0.0
  %1154 = vmatprep.subr.mxu0 0.0
  %1155 = vmatpush2.msra.mxu0 0.0
  %1156 = vmatprep.subr.mxu0 0.0
  %1157 = vmatpush2.msra.mxu0 0.0
  %1158 = vmatprep.subr.mxu0 0.0
  %1159 = vmatpush2.msra.mxu0 0.0
  %1160 = vmatprep.subr.mxu0 0.0
  %1161 = vmatpush2.msra.mxu0 0.0
  %1162 = vmatprep.subr.mxu0 0.0
  %1163 = vmatpush2.msra.mxu0 0.0
  %1164 = vmatprep.subr.mxu0 0.0
  %1165 = vmatpush2.msra.mxu0 0.0
  %1166 = vmatprep.subr.mxu0 0.0
  %1167 = vmatpush2.msra.mxu0 0.0
  %1168 = vmatprep.subr.mxu0 0.0
  %1169 = vmatpush2.msra.mxu0 0.0
  %1170 = vmatprep.subr.mxu0 0.0
  %1171 = vmatpush2.msra.mxu0 0.0
  %1172 = vmatprep.subr.mxu0 0.0
  %1173 = vmatpush2.msra.mxu0 0.0
  %1174 = vmatprep.subr.mxu0 0.0
  %1175 = vmatpush2.msra.mxu0 0.0
  %1176 = vmatprep.subr.mxu0 0.0
  %1177 = vmatpush2.msra.mxu0 0.0
  %1178 = vmatprep.subr.mxu0 0.0
  %1179 = vmatpush2.msra.mxu0 0.0
  %1180 = vmatprep.subr.mxu0 0.0
  %1181 = vmatpush2.msra.mxu0 0.0
  %1182 = vmatprep.subr.mxu0 0.0
  %1183 = vmatpush2.msra.mxu0 0.0
  %1184 = vmatprep.mubr.f32.mxu0 0.0
  %1185 = vmatmul.mubr.f32.gmra.mxu0 %v1118
  %v1186 = vpop.f32.mrf.mxu0
  %v1187 = vadd.f32 %v1115, %v1186
  %v1188 = vpop.f32.mrf.mxu0
  %1189 = vdwg.mxu0
  %v1190 = vmax.f32 %v1187, 0.0
  %v1191 = vlaneseq
  %v1192 = vshrl.u32 %v1191, 7
  %v1193 = vsub.s32 0, %v1192
  %v1194 = vrot.slane %v39, %v1193
  %v1196 = vsel %vm234, %v1190, 0
  %1198 = vmatprep.subr.mxu0 0.0
  %1199 = vmatpush1.msra.mxu0 0.0
  %1200 = vmatprep.subr.mxu0 0.0
  %1201 = vmatpush1.msra.mxu0 0.0
  %1202 = vmatprep.subr.mxu0 0.0
  %1203 = vmatpush1.msra.mxu0 0.0
  %1204 = vmatprep.subr.mxu0 0.0
  %1205 = vmatpush1.msra.mxu0 0.0
  %1206 = vmatprep.subr.mxu0 0.0
  %1207 = vmatpush1.msra.mxu0 0.0
  %1208 = vmatprep.subr.mxu0 0.0
  %1209 = vmatpush1.msra.mxu0 0.0
  %1210 = vmatprep.subr.mxu0 0.0
  %1211 = vmatpush1.msra.mxu0 0.0
  %1212 = vmatprep.subr.mxu0 0.0
  %1213 = vmatpush1.msra.mxu0 0.0
  %1214 = vmatprep.subr.mxu0 0.0
  %1215 = vmatpush1.msra.mxu0 0.0
  %1216 = vmatprep.subr.mxu0 0.0
  %1217 = vmatpush1.msra.mxu0 0.0
  %1218 = vmatprep.subr.mxu0 0.0
  %1219 = vmatpush1.msra.mxu0 0.0
  %1220 = vmatprep.subr.mxu0 0.0
  %1221 = vmatpush1.msra.mxu0 0.0
  %1222 = vmatprep.subr.mxu0 0.0
  %1223 = vmatpush1.msra.mxu0 %v37
  %1224 = vmatprep.subr.mxu0 0.0
  %1225 = vmatpush1.msra.mxu0 %v36
  %1226 = vmatprep.subr.mxu0 0.0
  %1227 = vmatpush1.msra.mxu0 %v35
  %1228 = vmatprep.subr.mxu0 0.0
  %1229 = vmatpush1.msra.mxu0 %v34
  %1230 = vmatprep.subr.mxu0 0.0
  %1231 = vmatpush2.msra.mxu0 0.0
  %1232 = vmatprep.subr.mxu0 0.0
  %1233 = vmatpush2.msra.mxu0 0.0
  %1234 = vmatprep.subr.mxu0 0.0
  %1235 = vmatpush2.msra.mxu0 0.0
  %1236 = vmatprep.subr.mxu0 0.0
  %1237 = vmatpush2.msra.mxu0 0.0
  %1238 = vmatprep.subr.mxu0 0.0
  %1239 = vmatpush2.msra.mxu0 0.0
  %1240 = vmatprep.subr.mxu0 0.0
  %1241 = vmatpush2.msra.mxu0 0.0
  %1242 = vmatprep.subr.mxu0 0.0
  %1243 = vmatpush2.msra.mxu0 0.0
  %1244 = vmatprep.subr.mxu0 0.0
  %1245 = vmatpush2.msra.mxu0 0.0
  %1246 = vmatprep.subr.mxu0 0.0
  %1247 = vmatpush2.msra.mxu0 0.0
  %1248 = vmatprep.subr.mxu0 0.0
  %1249 = vmatpush2.msra.mxu0 0.0
  %1250 = vmatprep.subr.mxu0 0.0
  %1251 = vmatpush2.msra.mxu0 0.0
  %1252 = vmatprep.subr.mxu0 0.0
  %1253 = vmatpush2.msra.mxu0 0.0
  %1254 = vmatprep.subr.mxu0 0.0
  %1255 = vmatpush2.msra.mxu0 0.0
  %1256 = vmatprep.subr.mxu0 0.0
  %1257 = vmatpush2.msra.mxu0 0.0
  %1258 = vmatprep.subr.mxu0 0.0
  %1259 = vmatpush2.msra.mxu0 0.0
  %1260 = vmatprep.subr.mxu0 0.0
  %1261 = vmatpush2.msra.mxu0 0.0
  %1262 = vmatprep.mubr.f32.mxu0 0.0
  %1263 = vmatmul.mubr.f32.gmra.mxu0 %v1196
  %v1264 = vpop.f32.mrf.mxu0
  %v1265 = vadd.f32 %v1194, %v1264
  %v1266 = vpop.f32.mrf.mxu0
  %1267 = vdwg.mxu0
  %v1268 = vsel %vm128, 0.0, 0
  %1270 = vmatprep.subr.mxu0 0.0
  %1271 = vmatpush1.msra.mxu0 0.0
  %1272 = vmatprep.subr.mxu0 0.0
  %1273 = vmatpush1.msra.mxu0 0.0
  %1274 = vmatprep.subr.mxu0 0.0
  %1275 = vmatpush1.msra.mxu0 0.0
  %1276 = vmatprep.subr.mxu0 0.0
  %1277 = vmatpush1.msra.mxu0 0.0
  %1278 = vmatprep.subr.mxu0 0.0
  %1279 = vmatpush1.msra.mxu0 0.0
  %1280 = vmatprep.subr.mxu0 0.0
  %1281 = vmatpush1.msra.mxu0 0.0
  %1282 = vmatprep.subr.mxu0 0.0
  %1283 = vmatpush1.msra.mxu0 0.0
  %1284 = vmatprep.subr.mxu0 0.0
  %1285 = vmatpush1.msra.mxu0 0.0
  %1286 = vmatprep.subr.mxu0 0.0
  %1287 = vmatpush1.msra.mxu0 0.0
  %1288 = vmatprep.subr.mxu0 0.0
  %1289 = vmatpush1.msra.mxu0 0.0
  %1290 = vmatprep.subr.mxu0 0.0
  %1291 = vmatpush1.msra.mxu0 0.0
  %1292 = vmatprep.subr.mxu0 0.0
  %1293 = vmatpush1.msra.mxu0 0.0
  %1294 = vmatprep.subr.mxu0 0.0
  %1295 = vmatpush1.msra.mxu0 0.0
  %1296 = vmatprep.subr.mxu0 0.0
  %1297 = vmatpush1.msra.mxu0 0.0
  %1298 = vmatprep.subr.mxu0 0.0
  %1299 = vmatpush1.msra.mxu0 0.0
  %1300 = vmatprep.subr.mxu0 0.0
  %1301 = vmatpush1.msra.mxu0 %v38
  %1302 = vmatprep.subr.mxu0 0.0
  %1303 = vmatpush2.msra.mxu0 0.0
  %1304 = vmatprep.subr.mxu0 0.0
  %1305 = vmatpush2.msra.mxu0 0.0
  %1306 = vmatprep.subr.mxu0 0.0
  %1307 = vmatpush2.msra.mxu0 0.0
  %1308 = vmatprep.subr.mxu0 0.0
  %1309 = vmatpush2.msra.mxu0 0.0
  %1310 = vmatprep.subr.mxu0 0.0
  %1311 = vmatpush2.msra.mxu0 0.0
  %1312 = vmatprep.subr.mxu0 0.0
  %1313 = vmatpush2.msra.mxu0 0.0
  %1314 = vmatprep.subr.mxu0 0.0
  %1315 = vmatpush2.msra.mxu0 0.0
  %1316 = vmatprep.subr.mxu0 0.0
  %1317 = vmatpush2.msra.mxu0 0.0
  %1318 = vmatprep.subr.mxu0 0.0
  %1319 = vmatpush2.msra.mxu0 0.0
  %1320 = vmatprep.subr.mxu0 0.0
  %1321 = vmatpush2.msra.mxu0 0.0
  %1322 = vmatprep.subr.mxu0 0.0
  %1323 = vmatpush2.msra.mxu0 0.0
  %1324 = vmatprep.subr.mxu0 0.0
  %1325 = vmatpush2.msra.mxu0 0.0
  %1326 = vmatprep.subr.mxu0 0.0
  %1327 = vmatpush2.msra.mxu0 0.0
  %1328 = vmatprep.subr.mxu0 0.0
  %1329 = vmatpush2.msra.mxu0 0.0
  %1330 = vmatprep.subr.mxu0 0.0
  %1331 = vmatpush2.msra.mxu0 0.0
  %1332 = vmatprep.subr.mxu0 0.0
  %1333 = vmatpush2.msra.mxu0 0.0
  %1334 = vmatprep.mubr.f32.mxu0 0.0
  %1335 = vmatmul.mubr.f32.gmra.mxu0 %v1268
  %v1336 = vpop.f32.mrf.mxu0
  %v1337 = vadd.f32 0.0, %v1336
  %v1338 = vpop.f32.mrf.mxu0
  %1339 = vdwg.mxu0
  %v1340 = vadd.f32 %v1265, %v1337
  %v1341 = vxor.u32 %v1340, 2147483648
  %v1342 = vmul.f32 %v1341, 1.442695
  %v1343 = vpow.pop %v1342
  %v1344 = vadd.f32 %v1343, 1.0
  %v1345 = vrcp.pop %v1344
  %v1346 = vmul.f32 1.0, %v1345
  %v1347 = vtanh.pop %v1340
  %v1348 = vmul.f32 %v1346, 0.0
  %1350 = vrot.lane.b32.xlu0 %v1347, 112
  %v1351 = vpop.permute.xlu0 %1350
  %v1353 = vmul.f32 %v1346, %v1351
  %1355 = vrot.lane.b32.xlu0 %v1353, 8
  %v1356 = vpop.permute.xlu0 %1355
  %v1358 = vadd.f32 %v1348, %v1356
  %v1359 = vtanh.pop %v1358
  %1361 = vrot.lane.b32.xlu0 %v1359, 16
  %v1362 = vpop.permute.xlu0 %1361
  %v1364 = vmul.f32 %v1346, %v1362
  %1366 = vrot.lane.b32.xlu0 %v1364, 104
  %v1367 = vpop.permute.xlu0 %1366
  %vm1369 = vcmask 60416
  %1370 = vst.msk [vmem:[%s5] sm:$0xf] %vm1369, %v1367
  %v1371 = vsel %vm128, %v1367, 0
  %1373 = vmatprep.subr.mxu0 0.0
  %1374 = vmatpush1.msra.mxu0 0.0
  %1375 = vmatprep.subr.mxu0 0.0
  %1376 = vmatpush1.msra.mxu0 0.0
  %1377 = vmatprep.subr.mxu0 0.0
  %1378 = vmatpush1.msra.mxu0 0.0
  %1379 = vmatprep.subr.mxu0 0.0
  %1380 = vmatpush1.msra.mxu0 0.0
  %1381 = vmatprep.subr.mxu0 0.0
  %1382 = vmatpush1.msra.mxu0 0.0
  %1383 = vmatprep.subr.mxu0 0.0
  %1384 = vmatpush1.msra.mxu0 0.0
  %1385 = vmatprep.subr.mxu0 0.0
  %1386 = vmatpush1.msra.mxu0 0.0
  %1387 = vmatprep.subr.mxu0 0.0
  %1388 = vmatpush1.msra.mxu0 0.0
  %1389 = vmatprep.subr.mxu0 0.0
  %1390 = vmatpush1.msra.mxu0 0.0
  %1391 = vmatprep.subr.mxu0 0.0
  %1392 = vmatpush1.msra.mxu0 0.0
  %1393 = vmatprep.subr.mxu0 0.0
  %1394 = vmatpush1.msra.mxu0 0.0
  %1395 = vmatprep.subr.mxu0 0.0
  %1396 = vmatpush1.msra.mxu0 0.0
  %1397 = vmatprep.subr.mxu0 0.0
  %1398 = vmatpush1.msra.mxu0 0.0
  %1399 = vmatprep.subr.mxu0 0.0
  %1400 = vmatpush1.msra.mxu0 0.0
  %1401 = vmatprep.subr.mxu0 0.0
  %1402 = vmatpush1.msra.mxu0 0.0
  %1403 = vmatprep.subr.mxu0 0.0
  %1404 = vmatpush1.msra.mxu0 %v38
  %1405 = vmatprep.subr.mxu0 0.0
  %1406 = vmatpush2.msra.mxu0 0.0
  %1407 = vmatprep.subr.mxu0 0.0
  %1408 = vmatpush2.msra.mxu0 0.0
  %1409 = vmatprep.subr.mxu0 0.0
  %1410 = vmatpush2.msra.mxu0 0.0
  %1411 = vmatprep.subr.mxu0 0.0
  %1412 = vmatpush2.msra.mxu0 0.0
  %1413 = vmatprep.subr.mxu0 0.0
  %1414 = vmatpush2.msra.mxu0 0.0
  %1415 = vmatprep.subr.mxu0 0.0
  %1416 = vmatpush2.msra.mxu0 0.0
  %1417 = vmatprep.subr.mxu0 0.0
  %1418 = vmatpush2.msra.mxu0 0.0
  %1419 = vmatprep.subr.mxu0 0.0
  %1420 = vmatpush2.msra.mxu0 0.0
  %1421 = vmatprep.subr.mxu0 0.0
  %1422 = vmatpush2.msra.mxu0 0.0
  %1423 = vmatprep.subr.mxu0 0.0
  %1424 = vmatpush2.msra.mxu0 0.0
  %1425 = vmatprep.subr.mxu0 0.0
  %1426 = vmatpush2.msra.mxu0 0.0
  %1427 = vmatprep.subr.mxu0 0.0
  %1428 = vmatpush2.msra.mxu0 0.0
  %1429 = vmatprep.subr.mxu0 0.0
  %1430 = vmatpush2.msra.mxu0 0.0
  %1431 = vmatprep.subr.mxu0 0.0
  %1432 = vmatpush2.msra.mxu0 0.0
  %1433 = vmatprep.subr.mxu0 0.0
  %1434 = vmatpush2.msra.mxu0 0.0
  %1435 = vmatprep.subr.mxu0 0.0
  %1436 = vmatpush2.msra.mxu0 0.0
  %1437 = vmatprep.mubr.f32.mxu0 0.0
  %1438 = vmatmul.mubr.f32.gmra.mxu0 %v1371
  %v1439 = vpop.f32.mrf.mxu0
  %v1440 = vadd.f32 0.0, %v1439
  %v1441 = vpop.f32.mrf.mxu0
  %1442 = vdwg.mxu0
  %v1443 = vadd.f32 %v1265, %v1440
  %v1444 = vxor.u32 %v1443, 2147483648
  %v1445 = vmul.f32 %v1444, 1.442695
  %v1446 = vpow.pop %v1445
  %v1447 = vadd.f32 %v1446, 1.0
  %v1448 = vrcp.pop %v1447
  %v1449 = vmul.f32 1.0, %v1448
  %v1450 = vtanh.pop %v1443
  %v1451 = vmul.f32 %v1449, %v1358
  %1453 = vrot.lane.b32.xlu0 %v1450, 112
  %v1454 = vpop.permute.xlu0 %1453
  %v1456 = vmul.f32 %v1449, %v1454
  %1458 = vrot.lane.b32.xlu0 %v1456, 8
  %v1459 = vpop.permute.xlu0 %1458
  %v1461 = vadd.f32 %v1451, %v1459
  %v1462 = vtanh.pop %v1461
  %1464 = vrot.lane.b32.xlu0 %v1462, 16
  %v1465 = vpop.permute.xlu0 %1464
  %v1467 = vmul.f32 %v1449, %v1465
  %1469 = vrot.lane.b32.xlu0 %v1467, 112
  %v1470 = vpop.permute.xlu0 %1469
  %vm1472 = vcmask 126016
  %1473 = vst.msk [vmem:[%s5] sm:$0xf] %vm1472, %v1470
  %1474 = vrot.lane.b32.xlu0 %v1467, 104
  %v1475 = vpop.permute.xlu0 %1474
  %v1476 = vsel %vm128, %v1475, 0
  %1478 = vmatprep.subr.mxu0 0.0
  %1479 = vmatpush1.msra.mxu0 0.0
  %1480 = vmatprep.subr.mxu0 0.0
  %1481 = vmatpush1.msra.mxu0 0.0
  %1482 = vmatprep.subr.mxu0 0.0
  %1483 = vmatpush1.msra.mxu0 0.0
  %1484 = vmatprep.subr.mxu0 0.0
  %1485 = vmatpush1.msra.mxu0 0.0
  %1486 = vmatprep.subr.mxu0 0.0
  %1487 = vmatpush1.msra.mxu0 0.0
  %1488 = vmatprep.subr.mxu0 0.0
  %1489 = vmatpush1.msra.mxu0 0.0
  %1490 = vmatprep.subr.mxu0 0.0
  %1491 = vmatpush1.msra.mxu0 0.0
  %1492 = vmatprep.subr.mxu0 0.0
  %1493 = vmatpush1.msra.mxu0 0.0
  %1494 = vmatprep.subr.mxu0 0.0
  %1495 = vmatpush1.msra.mxu0 0.0
  %1496 = vmatprep.subr.mxu0 0.0
  %1497 = vmatpush1.msra.mxu0 0.0
  %1498 = vmatprep.subr.mxu0 0.0
  %1499 = vmatpush1.msra.mxu0 0.0
  %1500 = vmatprep.subr.mxu0 0.0
  %1501 = vmatpush1.msra.mxu0 0.0
  %1502 = vmatprep.subr.mxu0 0.0
  %1503 = vmatpush1.msra.mxu0 0.0
  %1504 = vmatprep.subr.mxu0 0.0
  %1505 = vmatpush1.msra.mxu0 0.0
  %1506 = vmatprep.subr.mxu0 0.0
  %1507 = vmatpush1.msra.mxu0 0.0
  %1508 = vmatprep.subr.mxu0 0.0
  %1509 = vmatpush1.msra.mxu0 %v38
  %1510 = vmatprep.subr.mxu0 0.0
  %1511 = vmatpush2.msra.mxu0 0.0
  %1512 = vmatprep.subr.mxu0 0.0
  %1513 = vmatpush2.msra.mxu0 0.0
  %1514 = vmatprep.subr.mxu0 0.0
  %1515 = vmatpush2.msra.mxu0 0.0
  %1516 = vmatprep.subr.mxu0 0.0
  %1517 = vmatpush2.msra.mxu0 0.0
  %1518 = vmatprep.subr.mxu0 0.0
  %1519 = vmatpush2.msra.mxu0 0.0
  %1520 = vmatprep.subr.mxu0 0.0
  %1521 = vmatpush2.msra.mxu0 0.0
  %1522 = vmatprep.subr.mxu0 0.0
  %1523 = vmatpush2.msra.mxu0 0.0
  %1524 = vmatprep.subr.mxu0 0.0
  %1525 = vmatpush2.msra.mxu0 0.0
  %1526 = vmatprep.subr.mxu0 0.0
  %1527 = vmatpush2.msra.mxu0 0.0
  %1528 = vmatprep.subr.mxu0 0.0
  %1529 = vmatpush2.msra.mxu0 0.0
  %1530 = vmatprep.subr.mxu0 0.0
  %1531 = vmatpush2.msra.mxu0 0.0
  %1532 = vmatprep.subr.mxu0 0.0
  %1533 = vmatpush2.msra.mxu0 0.0
  %1534 = vmatprep.subr.mxu0 0.0
  %1535 = vmatpush2.msra.mxu0 0.0
  %1536 = vmatprep.subr.mxu0 0.0
  %1537 = vmatpush2.msra.mxu0 0.0
  %1538 = vmatprep.subr.mxu0 0.0
  %1539 = vmatpush2.msra.mxu0 0.0
  %1540 = vmatprep.subr.mxu0 0.0
  %1541 = vmatpush2.msra.mxu0 0.0
  %1542 = vmatprep.mubr.f32.mxu0 0.0
  %1543 = vmatmul.mubr.f32.gmra.mxu0 %v1476
  %v1544 = vpop.f32.mrf.mxu0
  %v1545 = vadd.f32 0.0, %v1544
  %v1546 = vpop.f32.mrf.mxu0
  %1547 = vdwg.mxu0
  %v1548 = vadd.f32 %v1265, %v1545
  %v1549 = vxor.u32 %v1548, 2147483648
  %v1550 = vmul.f32 %v1549, 1.442695
  %v1551 = vpow.pop %v1550
  %v1552 = vadd.f32 %v1551, 1.0
  %v1553 = vrcp.pop %v1552
  %v1554 = vmul.f32 1.0, %v1553
  %v1555 = vtanh.pop %v1548
  %v1556 = vmul.f32 %v1554, %v1461
  %1558 = vrot.lane.b32.xlu0 %v1555, 112
  %v1559 = vpop.permute.xlu0 %1558
  %v1561 = vmul.f32 %v1554, %v1559
  %1563 = vrot.lane.b32.xlu0 %v1561, 8
  %v1564 = vpop.permute.xlu0 %1563
  %v1566 = vadd.f32 %v1556, %v1564
  %v1567 = vtanh.pop %v1566
  %1569 = vrot.lane.b32.xlu0 %v1567, 16
  %v1570 = vpop.permute.xlu0 %1569
  %v1572 = vmul.f32 %v1554, %v1570
  %1574 = vrot.lane.b32.xlu0 %v1572, 120
  %v1575 = vpop.permute.xlu0 %1574
  %vm1577 = vcmask 191616
  %1578 = vst.msk [vmem:[%s5] sm:$0xf] %vm1577, %v1575
  %1579 = vrot.lane.b32.xlu0 %v1572, 104
  %v1580 = vpop.permute.xlu0 %1579
  %v1581 = vsel %vm128, %v1580, 0
  %1583 = vmatprep.subr.mxu0 0.0
  %1584 = vmatpush1.msra.mxu0 0.0
  %1585 = vmatprep.subr.mxu0 0.0
  %1586 = vmatpush1.msra.mxu0 0.0
  %1587 = vmatprep.subr.mxu0 0.0
  %1588 = vmatpush1.msra.mxu0 0.0
  %1589 = vmatprep.subr.mxu0 0.0
  %1590 = vmatpush1.msra.mxu0 0.0
  %1591 = vmatprep.subr.mxu0 0.0
  %1592 = vmatpush1.msra.mxu0 0.0
  %1593 = vmatprep.subr.mxu0 0.0
  %1594 = vmatpush1.msra.mxu0 0.0
  %1595 = vmatprep.subr.mxu0 0.0
  %1596 = vmatpush1.msra.mxu0 0.0
  %1597 = vmatprep.subr.mxu0 0.0
  %1598 = vmatpush1.msra.mxu0 0.0
  %1599 = vmatprep.subr.mxu0 0.0
  %1600 = vmatpush1.msra.mxu0 0.0
  %1601 = vmatprep.subr.mxu0 0.0
  %1602 = vmatpush1.msra.mxu0 0.0
  %1603 = vmatprep.subr.mxu0 0.0
  %1604 = vmatpush1.msra.mxu0 0.0
  %1605 = vmatprep.subr.mxu0 0.0
  %1606 = vmatpush1.msra.mxu0 0.0
  %1607 = vmatprep.subr.mxu0 0.0
  %1608 = vmatpush1.msra.mxu0 0.0
  %1609 = vmatprep.subr.mxu0 0.0
  %1610 = vmatpush1.msra.mxu0 0.0
  %1611 = vmatprep.subr.mxu0 0.0
  %1612 = vmatpush1.msra.mxu0 0.0
  %1613 = vmatprep.subr.mxu0 0.0
  %1614 = vmatpush1.msra.mxu0 %v38
  %1615 = vmatprep.subr.mxu0 0.0
  %1616 = vmatpush2.msra.mxu0 0.0
  %1617 = vmatprep.subr.mxu0 0.0
  %1618 = vmatpush2.msra.mxu0 0.0
  %1619 = vmatprep.subr.mxu0 0.0
  %1620 = vmatpush2.msra.mxu0 0.0
  %1621 = vmatprep.subr.mxu0 0.0
  %1622 = vmatpush2.msra.mxu0 0.0
  %1623 = vmatprep.subr.mxu0 0.0
  %1624 = vmatpush2.msra.mxu0 0.0
  %1625 = vmatprep.subr.mxu0 0.0
  %1626 = vmatpush2.msra.mxu0 0.0
  %1627 = vmatprep.subr.mxu0 0.0
  %1628 = vmatpush2.msra.mxu0 0.0
  %1629 = vmatprep.subr.mxu0 0.0
  %1630 = vmatpush2.msra.mxu0 0.0
  %1631 = vmatprep.subr.mxu0 0.0
  %1632 = vmatpush2.msra.mxu0 0.0
  %1633 = vmatprep.subr.mxu0 0.0
  %1634 = vmatpush2.msra.mxu0 0.0
  %1635 = vmatprep.subr.mxu0 0.0
  %1636 = vmatpush2.msra.mxu0 0.0
  %1637 = vmatprep.subr.mxu0 0.0
  %1638 = vmatpush2.msra.mxu0 0.0
  %1639 = vmatprep.subr.mxu0 0.0
  %1640 = vmatpush2.msra.mxu0 0.0
  %1641 = vmatprep.subr.mxu0 0.0
  %1642 = vmatpush2.msra.mxu0 0.0
  %1643 = vmatprep.subr.mxu0 0.0
  %1644 = vmatpush2.msra.mxu0 0.0
  %1645 = vmatprep.subr.mxu0 0.0
  %1646 = vmatpush2.msra.mxu0 0.0
  %1647 = vmatprep.mubr.f32.mxu0 0.0
  %1648 = vmatmul.mubr.f32.gmra.mxu0 %v1581
  %v1649 = vpop.f32.mrf.mxu0
  %v1650 = vadd.f32 0.0, %v1649
  %v1651 = vpop.f32.mrf.mxu0
  %1652 = vdwg.mxu0
  %v1653 = vadd.f32 %v1265, %v1650
  %v1654 = vxor.u32 %v1653, 2147483648
  %v1655 = vmul.f32 %v1654, 1.442695
  %v1656 = vpow.pop %v1655
  %v1657 = vadd.f32 %v1656, 1.0
  %v1658 = vrcp.pop %v1657
  %v1659 = vmul.f32 1.0, %v1658
  %v1660 = vtanh.pop %v1653
  %v1661 = vmul.f32 %v1659, %v1566
  %1663 = vrot.lane.b32.xlu0 %v1660, 112
  %v1664 = vpop.permute.xlu0 %1663
  %v1666 = vmul.f32 %v1659, %v1664
  %1668 = vrot.lane.b32.xlu0 %v1666, 8
  %v1669 = vpop.permute.xlu0 %1668
  %v1671 = vadd.f32 %v1661, %v1669
  %v1672 = vtanh.pop %v1671
  %1674 = vrot.lane.b32.xlu0 %v1672, 16
  %v1675 = vpop.permute.xlu0 %1674
  %v1677 = vmul.f32 %v1659, %v1675
  %vm1678 = vcmask 257216
  %1679 = vst.msk [vmem:[%s5] sm:$0xf] %vm1678, %v1677
  %1681 = vrot.lane.b32.xlu0 %v1677, 104
  %v1682 = vpop.permute.xlu0 %1681
  %v1683 = vsel %vm128, %v1682, 0
  %1685 = vmatprep.subr.mxu0 0.0
  %1686 = vmatpush1.msra.mxu0 0.0
  %1687 = vmatprep.subr.mxu0 0.0
  %1688 = vmatpush1.msra.mxu0 0.0
  %1689 = vmatprep.subr.mxu0 0.0
  %1690 = vmatpush1.msra.mxu0 0.0
  %1691 = vmatprep.subr.mxu0 0.0
  %1692 = vmatpush1.msra.mxu0 0.0
  %1693 = vmatprep.subr.mxu0 0.0
  %1694 = vmatpush1.msra.mxu0 0.0
  %1695 = vmatprep.subr.mxu0 0.0
  %1696 = vmatpush1.msra.mxu0 0.0
  %1697 = vmatprep.subr.mxu0 0.0
  %1698 = vmatpush1.msra.mxu0 0.0
  %1699 = vmatprep.subr.mxu0 0.0
  %1700 = vmatpush1.msra.mxu0 0.0
  %1701 = vmatprep.subr.mxu0 0.0
  %1702 = vmatpush1.msra.mxu0 0.0
  %1703 = vmatprep.subr.mxu0 0.0
  %1704 = vmatpush1.msra.mxu0 0.0
  %1705 = vmatprep.subr.mxu0 0.0
  %1706 = vmatpush1.msra.mxu0 0.0
  %1707 = vmatprep.subr.mxu0 0.0
  %1708 = vmatpush1.msra.mxu0 0.0
  %1709 = vmatprep.subr.mxu0 0.0
  %1710 = vmatpush1.msra.mxu0 0.0
  %1711 = vmatprep.subr.mxu0 0.0
  %1712 = vmatpush1.msra.mxu0 0.0
  %1713 = vmatprep.subr.mxu0 0.0
  %1714 = vmatpush1.msra.mxu0 0.0
  %1715 = vmatprep.subr.mxu0 0.0
  %1716 = vmatpush1.msra.mxu0 %v38
  %1717 = vmatprep.subr.mxu0 0.0
  %1718 = vmatpush2.msra.mxu0 0.0
  %1719 = vmatprep.subr.mxu0 0.0
  %1720 = vmatpush2.msra.mxu0 0.0
  %1721 = vmatprep.subr.mxu0 0.0
  %1722 = vmatpush2.msra.mxu0 0.0
  %1723 = vmatprep.subr.mxu0 0.0
  %1724 = vmatpush2.msra.mxu0 0.0
  %1725 = vmatprep.subr.mxu0 0.0
  %1726 = vmatpush2.msra.mxu0 0.0
  %1727 = vmatprep.subr.mxu0 0.0
  %1728 = vmatpush2.msra.mxu0 0.0
  %1729 = vmatprep.subr.mxu0 0.0
  %1730 = vmatpush2.msra.mxu0 0.0
  %1731 = vmatprep.subr.mxu0 0.0
  %1732 = vmatpush2.msra.mxu0 0.0
  %1733 = vmatprep.subr.mxu0 0.0
  %1734 = vmatpush2.msra.mxu0 0.0
  %1735 = vmatprep.subr.mxu0 0.0
  %1736 = vmatpush2.msra.mxu0 0.0
  %1737 = vmatprep.subr.mxu0 0.0
  %1738 = vmatpush2.msra.mxu0 0.0
  %1739 = vmatprep.subr.mxu0 0.0
  %1740 = vmatpush2.msra.mxu0 0.0
  %1741 = vmatprep.subr.mxu0 0.0
  %1742 = vmatpush2.msra.mxu0 0.0
  %1743 = vmatprep.subr.mxu0 0.0
  %1744 = vmatpush2.msra.mxu0 0.0
  %1745 = vmatprep.subr.mxu0 0.0
  %1746 = vmatpush2.msra.mxu0 0.0
  %1747 = vmatprep.subr.mxu0 0.0
  %1748 = vmatpush2.msra.mxu0 0.0
  %1749 = vmatprep.mubr.f32.mxu0 0.0
  %1750 = vmatmul.mubr.f32.gmra.mxu0 %v1683
  %v1751 = vpop.f32.mrf.mxu0
  %v1752 = vadd.f32 0.0, %v1751
  %v1753 = vpop.f32.mrf.mxu0
  %1754 = vdwg.mxu0
  %v1755 = vadd.f32 %v1265, %v1752
  %v1756 = vxor.u32 %v1755, 2147483648
  %v1757 = vmul.f32 %v1756, 1.442695
  %v1758 = vpow.pop %v1757
  %v1759 = vadd.f32 %v1758, 1.0
  %v1760 = vrcp.pop %v1759
  %v1761 = vmul.f32 1.0, %v1760
  %v1762 = vtanh.pop %v1755
  %v1763 = vmul.f32 %v1761, %v1671
  %1765 = vrot.lane.b32.xlu0 %v1762, 112
  %v1766 = vpop.permute.xlu0 %1765
  %v1768 = vmul.f32 %v1761, %v1766
  %1770 = vrot.lane.b32.xlu0 %v1768, 8
  %v1771 = vpop.permute.xlu0 %1770
  %v1773 = vadd.f32 %v1763, %v1771
  %v1774 = vtanh.pop %v1773
  %1776 = vrot.lane.b32.xlu0 %v1774, 16
  %v1777 = vpop.permute.xlu0 %1776
  %v1779 = vmul.f32 %v1761, %v1777
  %1781 = vrot.lane.b32.xlu0 %v1779, 8
  %v1782 = vpop.permute.xlu0 %1781
  %vm1784 = vcmask 322816
  %1785 = vst.msk [vmem:[%s5] sm:$0xf] %vm1784, %v1782
  %1786 = vrot.lane.b32.xlu0 %v1779, 104
  %v1787 = vpop.permute.xlu0 %1786
  %v1788 = vsel %vm128, %v1787, 0
  %1790 = vmatprep.subr.mxu0 0.0
  %1791 = vmatpush1.msra.mxu0 0.0
  %1792 = vmatprep.subr.mxu0 0.0
  %1793 = vmatpush1.msra.mxu0 0.0
  %1794 = vmatprep.subr.mxu0 0.0
  %1795 = vmatpush1.msra.mxu0 0.0
  %1796 = vmatprep.subr.mxu0 0.0
  %1797 = vmatpush1.msra.mxu0 0.0
  %1798 = vmatprep.subr.mxu0 0.0
  %1799 = vmatpush1.msra.mxu0 0.0
  %1800 = vmatprep.subr.mxu0 0.0
  %1801 = vmatpush1.msra.mxu0 0.0
  %1802 = vmatprep.subr.mxu0 0.0
  %1803 = vmatpush1.msra.mxu0 0.0
  %1804 = vmatprep.subr.mxu0 0.0
  %1805 = vmatpush1.msra.mxu0 0.0
  %1806 = vmatprep.subr.mxu0 0.0
  %1807 = vmatpush1.msra.mxu0 0.0
  %1808 = vmatprep.subr.mxu0 0.0
  %1809 = vmatpush1.msra.mxu0 0.0
  %1810 = vmatprep.subr.mxu0 0.0
  %1811 = vmatpush1.msra.mxu0 0.0
  %1812 = vmatprep.subr.mxu0 0.0
  %1813 = vmatpush1.msra.mxu0 0.0
  %1814 = vmatprep.subr.mxu0 0.0
  %1815 = vmatpush1.msra.mxu0 0.0
  %1816 = vmatprep.subr.mxu0 0.0
  %1817 = vmatpush1.msra.mxu0 0.0
  %1818 = vmatprep.subr.mxu0 0.0
  %1819 = vmatpush1.msra.mxu0 0.0
  %1820 = vmatprep.subr.mxu0 0.0
  %1821 = vmatpush1.msra.mxu0 %v38
  %1822 = vmatprep.subr.mxu0 0.0
  %1823 = vmatpush2.msra.mxu0 0.0
  %1824 = vmatprep.subr.mxu0 0.0
  %1825 = vmatpush2.msra.mxu0 0.0
  %1826 = vmatprep.subr.mxu0 0.0
  %1827 = vmatpush2.msra.mxu0 0.0
  %1828 = vmatprep.subr.mxu0 0.0
  %1829 = vmatpush2.msra.mxu0 0.0
  %1830 = vmatprep.subr.mxu0 0.0
  %1831 = vmatpush2.msra.mxu0 0.0
  %1832 = vmatprep.subr.mxu0 0.0
  %1833 = vmatpush2.msra.mxu0 0.0
  %1834 = vmatprep.subr.mxu0 0.0
  %1835 = vmatpush2.msra.mxu0 0.0
  %1836 = vmatprep.subr.mxu0 0.0
  %1837 = vmatpush2.msra.mxu0 0.0
  %1838 = vmatprep.subr.mxu0 0.0
  %1839 = vmatpush2.msra.mxu0 0.0
  %1840 = vmatprep.subr.mxu0 0.0
  %1841 = vmatpush2.msra.mxu0 0.0
  %1842 = vmatprep.subr.mxu0 0.0
  %1843 = vmatpush2.msra.mxu0 0.0
  %1844 = vmatprep.subr.mxu0 0.0
  %1845 = vmatpush2.msra.mxu0 0.0
  %1846 = vmatprep.subr.mxu0 0.0
  %1847 = vmatpush2.msra.mxu0 0.0
  %1848 = vmatprep.subr.mxu0 0.0
  %1849 = vmatpush2.msra.mxu0 0.0
  %1850 = vmatprep.subr.mxu0 0.0
  %1851 = vmatpush2.msra.mxu0 0.0
  %1852 = vmatprep.subr.mxu0 0.0
  %1853 = vmatpush2.msra.mxu0 0.0
  %1854 = vmatprep.mubr.f32.mxu0 0.0
  %1855 = vmatmul.mubr.f32.gmra.mxu0 %v1788
  %v1856 = vpop.f32.mrf.mxu0
  %v1857 = vadd.f32 0.0, %v1856
  %v1858 = vpop.f32.mrf.mxu0
  %1859 = vdwg.mxu0
  %v1860 = vadd.f32 %v1265, %v1857
  %v1861 = vxor.u32 %v1860, 2147483648
  %v1862 = vmul.f32 %v1861, 1.442695
  %v1863 = vpow.pop %v1862
  %v1864 = vadd.f32 %v1863, 1.0
  %v1865 = vrcp.pop %v1864
  %v1866 = vmul.f32 1.0, %v1865
  %v1867 = vtanh.pop %v1860
  %v1868 = vmul.f32 %v1866, %v1773
  %1870 = vrot.lane.b32.xlu0 %v1867, 112
  %v1871 = vpop.permute.xlu0 %1870
  %v1873 = vmul.f32 %v1866, %v1871
  %1875 = vrot.lane.b32.xlu0 %v1873, 8
  %v1876 = vpop.permute.xlu0 %1875
  %v1878 = vadd.f32 %v1868, %v1876
  %v1879 = vtanh.pop %v1878
  %1881 = vrot.lane.b32.xlu0 %v1879, 16
  %v1882 = vpop.permute.xlu0 %1881
  %v1884 = vmul.f32 %v1866, %v1882
  %1886 = vrot.lane.b32.xlu0 %v1884, 16
  %v1887 = vpop.permute.xlu0 %1886
  %vm1889 = vcmask 388416
  %1890 = vst.msk [vmem:[%s5] sm:$0xf] %vm1889, %v1887
  %1891 = vrot.lane.b32.xlu0 %v1884, 104
  %v1892 = vpop.permute.xlu0 %1891
  %v1893 = vsel %vm128, %v1892, 0
  %1895 = vmatprep.subr.mxu0 0.0
  %1896 = vmatpush1.msra.mxu0 0.0
  %1897 = vmatprep.subr.mxu0 0.0
  %1898 = vmatpush1.msra.mxu0 0.0
  %1899 = vmatprep.subr.mxu0 0.0
  %1900 = vmatpush1.msra.mxu0 0.0
  %1901 = vmatprep.subr.mxu0 0.0
  %1902 = vmatpush1.msra.mxu0 0.0
  %1903 = vmatprep.subr.mxu0 0.0
  %1904 = vmatpush1.msra.mxu0 0.0
  %1905 = vmatprep.subr.mxu0 0.0
  %1906 = vmatpush1.msra.mxu0 0.0
  %1907 = vmatprep.subr.mxu0 0.0
  %1908 = vmatpush1.msra.mxu0 0.0
  %1909 = vmatprep.subr.mxu0 0.0
  %1910 = vmatpush1.msra.mxu0 0.0
  %1911 = vmatprep.subr.mxu0 0.0
  %1912 = vmatpush1.msra.mxu0 0.0
  %1913 = vmatprep.subr.mxu0 0.0
  %1914 = vmatpush1.msra.mxu0 0.0
  %1915 = vmatprep.subr.mxu0 0.0
  %1916 = vmatpush1.msra.mxu0 0.0
  %1917 = vmatprep.subr.mxu0 0.0
  %1918 = vmatpush1.msra.mxu0 0.0
  %1919 = vmatprep.subr.mxu0 0.0
  %1920 = vmatpush1.msra.mxu0 0.0
  %1921 = vmatprep.subr.mxu0 0.0
  %1922 = vmatpush1.msra.mxu0 0.0
  %1923 = vmatprep.subr.mxu0 0.0
  %1924 = vmatpush1.msra.mxu0 0.0
  %1925 = vmatprep.subr.mxu0 0.0
  %1926 = vmatpush1.msra.mxu0 %v38
  %1927 = vmatprep.subr.mxu0 0.0
  %1928 = vmatpush2.msra.mxu0 0.0
  %1929 = vmatprep.subr.mxu0 0.0
  %1930 = vmatpush2.msra.mxu0 0.0
  %1931 = vmatprep.subr.mxu0 0.0
  %1932 = vmatpush2.msra.mxu0 0.0
  %1933 = vmatprep.subr.mxu0 0.0
  %1934 = vmatpush2.msra.mxu0 0.0
  %1935 = vmatprep.subr.mxu0 0.0
  %1936 = vmatpush2.msra.mxu0 0.0
  %1937 = vmatprep.subr.mxu0 0.0
  %1938 = vmatpush2.msra.mxu0 0.0
  %1939 = vmatprep.subr.mxu0 0.0
  %1940 = vmatpush2.msra.mxu0 0.0
  %1941 = vmatprep.subr.mxu0 0.0
  %1942 = vmatpush2.msra.mxu0 0.0
  %1943 = vmatprep.subr.mxu0 0.0
  %1944 = vmatpush2.msra.mxu0 0.0
  %1945 = vmatprep.subr.mxu0 0.0
  %1946 = vmatpush2.msra.mxu0 0.0
  %1947 = vmatprep.subr.mxu0 0.0
  %1948 = vmatpush2.msra.mxu0 0.0
  %1949 = vmatprep.subr.mxu0 0.0
  %1950 = vmatpush2.msra.mxu0 0.0
  %1951 = vmatprep.subr.mxu0 0.0
  %1952 = vmatpush2.msra.mxu0 0.0
  %1953 = vmatprep.subr.mxu0 0.0
  %1954 = vmatpush2.msra.mxu0 0.0
  %1955 = vmatprep.subr.mxu0 0.0
  %1956 = vmatpush2.msra.mxu0 0.0
  %1957 = vmatprep.subr.mxu0 0.0
  %1958 = vmatpush2.msra.mxu0 0.0
  %1959 = vmatprep.mubr.f32.mxu0 0.0
  %1960 = vmatmul.mubr.f32.gmra.mxu0 %v1893
  %v1961 = vpop.f32.mrf.mxu0
  %v1962 = vadd.f32 0.0, %v1961
  %v1963 = vpop.f32.mrf.mxu0
  %1964 = vdwg.mxu0
  %v1965 = vadd.f32 %v1265, %v1962
  %v1966 = vxor.u32 %v1965, 2147483648
  %v1967 = vmul.f32 %v1966, 1.442695
  %v1968 = vpow.pop %v1967
  %v1969 = vadd.f32 %v1968, 1.0
  %v1970 = vrcp.pop %v1969
  %v1971 = vmul.f32 1.0, %v1970
  %v1972 = vtanh.pop %v1965
  %v1973 = vmul.f32 %v1971, %v1878
  %1975 = vrot.lane.b32.xlu0 %v1972, 112
  %v1976 = vpop.permute.xlu0 %1975
  %v1978 = vmul.f32 %v1971, %v1976
  %1980 = vrot.lane.b32.xlu0 %v1978, 8
  %v1981 = vpop.permute.xlu0 %1980
  %v1983 = vadd.f32 %v1973, %v1981
  %v1984 = vtanh.pop %v1983
  %1986 = vrot.lane.b32.xlu0 %v1984, 16
  %v1987 = vpop.permute.xlu0 %1986
  %v1989 = vmul.f32 %v1971, %v1987
  %1991 = vrot.lane.b32.xlu0 %v1989, 24
  %v1992 = vpop.permute.xlu0 %1991
  %vm1994 = vcmask 454016
  %1995 = vst.msk [vmem:[%s5] sm:$0xf] %vm1994, %v1992
  %1996 = vrot.lane.b32.xlu0 %v1989, 104
  %v1997 = vpop.permute.xlu0 %1996
  %v1998 = vsel %vm128, %v1997, 0
  %2000 = vmatprep.subr.mxu0 0.0
  %2001 = vmatpush1.msra.mxu0 0.0
  %2002 = vmatprep.subr.mxu0 0.0
  %2003 = vmatpush1.msra.mxu0 0.0
  %2004 = vmatprep.subr.mxu0 0.0
  %2005 = vmatpush1.msra.mxu0 0.0
  %2006 = vmatprep.subr.mxu0 0.0
  %2007 = vmatpush1.msra.mxu0 0.0
  %2008 = vmatprep.subr.mxu0 0.0
  %2009 = vmatpush1.msra.mxu0 0.0
  %2010 = vmatprep.subr.mxu0 0.0
  %2011 = vmatpush1.msra.mxu0 0.0
  %2012 = vmatprep.subr.mxu0 0.0
  %2013 = vmatpush1.msra.mxu0 0.0
  %2014 = vmatprep.subr.mxu0 0.0
  %2015 = vmatpush1.msra.mxu0 0.0
  %2016 = vmatprep.subr.mxu0 0.0
  %2017 = vmatpush1.msra.mxu0 0.0
  %2018 = vmatprep.subr.mxu0 0.0
  %2019 = vmatpush1.msra.mxu0 0.0
  %2020 = vmatprep.subr.mxu0 0.0
  %2021 = vmatpush1.msra.mxu0 0.0
  %2022 = vmatprep.subr.mxu0 0.0
  %2023 = vmatpush1.msra.mxu0 0.0
  %2024 = vmatprep.subr.mxu0 0.0
  %2025 = vmatpush1.msra.mxu0 0.0
  %2026 = vmatprep.subr.mxu0 0.0
  %2027 = vmatpush1.msra.mxu0 0.0
  %2028 = vmatprep.subr.mxu0 0.0
  %2029 = vmatpush1.msra.mxu0 0.0
  %2030 = vmatprep.subr.mxu0 0.0
  %2031 = vmatpush1.msra.mxu0 %v38
  %2032 = vmatprep.subr.mxu0 0.0
  %2033 = vmatpush2.msra.mxu0 0.0
  %2034 = vmatprep.subr.mxu0 0.0
  %2035 = vmatpush2.msra.mxu0 0.0
  %2036 = vmatprep.subr.mxu0 0.0
  %2037 = vmatpush2.msra.mxu0 0.0
  %2038 = vmatprep.subr.mxu0 0.0
  %2039 = vmatpush2.msra.mxu0 0.0
  %2040 = vmatprep.subr.mxu0 0.0
  %2041 = vmatpush2.msra.mxu0 0.0
  %2042 = vmatprep.subr.mxu0 0.0
  %2043 = vmatpush2.msra.mxu0 0.0
  %2044 = vmatprep.subr.mxu0 0.0
  %2045 = vmatpush2.msra.mxu0 0.0
  %2046 = vmatprep.subr.mxu0 0.0
  %2047 = vmatpush2.msra.mxu0 0.0
  %2048 = vmatprep.subr.mxu0 0.0
  %2049 = vmatpush2.msra.mxu0 0.0
  %2050 = vmatprep.subr.mxu0 0.0
  %2051 = vmatpush2.msra.mxu0 0.0
  %2052 = vmatprep.subr.mxu0 0.0
  %2053 = vmatpush2.msra.mxu0 0.0
  %2054 = vmatprep.subr.mxu0 0.0
  %2055 = vmatpush2.msra.mxu0 0.0
  %2056 = vmatprep.subr.mxu0 0.0
  %2057 = vmatpush2.msra.mxu0 0.0
  %2058 = vmatprep.subr.mxu0 0.0
  %2059 = vmatpush2.msra.mxu0 0.0
  %2060 = vmatprep.subr.mxu0 0.0
  %2061 = vmatpush2.msra.mxu0 0.0
  %2062 = vmatprep.subr.mxu0 0.0
  %2063 = vmatpush2.msra.mxu0 0.0
  %2064 = vmatprep.mubr.f32.mxu0 0.0
  %2065 = vmatmul.mubr.f32.gmra.mxu0 %v1998
  %v2066 = vpop.f32.mrf.mxu0
  %v2067 = vadd.f32 0.0, %v2066
  %v2068 = vpop.f32.mrf.mxu0
  %2069 = vdwg.mxu0
  %v2070 = vadd.f32 %v1265, %v2067
  %v2071 = vxor.u32 %v2070, 2147483648
  %v2072 = vmul.f32 %v2071, 1.442695
  %v2073 = vpow.pop %v2072
  %v2074 = vadd.f32 %v2073, 1.0
  %v2075 = vrcp.pop %v2074
  %v2076 = vmul.f32 1.0, %v2075
  %v2077 = vtanh.pop %v2070
  %v2078 = vmul.f32 %v2076, %v1983
  %2080 = vrot.lane.b32.xlu0 %v2077, 112
  %v2081 = vpop.permute.xlu0 %2080
  %v2083 = vmul.f32 %v2076, %v2081
  %2085 = vrot.lane.b32.xlu0 %v2083, 8
  %v2086 = vpop.permute.xlu0 %2085
  %v2088 = vadd.f32 %v2078, %v2086
  %v2089 = vtanh.pop %v2088
  %2091 = vrot.lane.b32.xlu0 %v2089, 16
  %v2092 = vpop.permute.xlu0 %2091
  %v2094 = vmul.f32 %v2076, %v2092
  %2096 = vrot.lane.b32.xlu0 %v2094, 32
  %v2097 = vpop.permute.xlu0 %2096
  %vm2099 = vcmask 519616
  %2100 = vst.msk [vmem:[%s5] sm:$0xf] %vm2099, %v2097
  // Predicated region
  $region22: #{lstm_autoencoder_forward.1} parent=0 // pred_check
    _
  $region23: #{lstm_autoencoder_forward.1} parent=0 // pred_check_branch
    %2102 = sbr.rel (0) target = $region25
  $region24: #{lstm_autoencoder_forward.1} parent=0 // pred_region
    _
  $region25: #{lstm_autoencoder_forward.1} parent=0 // pred_fallthru
    _
  // Predicated region
  $region26: #{lstm_autoencoder_forward.1} parent=0 // pred_check
    _
  $region27: #{lstm_autoencoder_forward.1} parent=0 // pred_check_branch
    %2104 = sbr.rel (0) target = $region29
  $region28: #{lstm_autoencoder_forward.1} parent=0 // pred_region
    _
  $region29: #{lstm_autoencoder_forward.1} parent=0 // pred_fallthru
    _

</llo_original>
